<compile_context>
chip_gen: v7x
topology: tpu7x:2x2x1
jax: 0.10.0
libtpu: 0.0.40
codegen_flags: <defaults>
</compile_context>

<pallas_src>
import math

import jax
import jax.numpy as jnp
from jax.experimental import pallas as pl
from jax.experimental.pallas import tpu as pltpu

LANE = 128     # vreg lane width: feature dims padded to a multiple of this
SUBLANE = 8    # vreg sublane height: batch tiles are a multiple of this


def _round_up(n, m):
    return ((n + m - 1) // m) * m


def _cdiv(a, b):
    return -(-a // b)


def _pad2d(a, rows, cols):
    r, c = a.shape
    return jnp.pad(a, ((0, rows - r), (0, cols - c)))


def _default_vmem_limit():
    """Device-kind aware VMEM cap: v5e/v6e have 128 MiB physical, v7x only 64."""
    try:
        kind = jax.devices()[0].device_kind.lower()
    except Exception:  # pragma: no cover
        kind = ""
    if "v5" in kind or "v6" in kind:
        return 100 * 1024 * 1024
    return 48 * 1024 * 1024


def vae_forward(x, eps, params, *, block_b=1024):
    """x: (B, D) f32; eps: (B, E) f32 reparameterization noise.
    params: (ew1, eb1, ew2, eb2, wm, bm, wv, bv, dw1, db1, dw2, db2) with
    weights stored as (in_features, out_features).
    Returns (h, x_recon, loss) matching the PyTorch VAE.forward."""
    (ew1, eb1, ew2, eb2, wm, bm, wv, bv, dw1, db1, dw2, db2) = params
    B, D = x.shape
    He = ew1.shape[1]          # encoder hidden = D // 2
    E = ew2.shape[1]           # n_embeddings
    Hd = dw1.shape[1]          # decoder hidden = 2 * D
    assert ew1.shape == (D, He) and ew2.shape == (He, E)
    assert wm.shape == (E, E) and wv.shape == (E, E)
    assert dw1.shape == (E, Hd) and dw2.shape == (Hd, D)
    assert eps.shape == (B, E)

    f32, bf16 = jnp.float32, jnp.bfloat16

    # Lane-dense padded feature extents (multiples of 128).
    Dp = _round_up(D, LANE)
    Hep = _round_up(He, LANE)
    Ep = _round_up(E, LANE)
    Hdp = _round_up(Hd, LANE)

    # ---- VMEM-budget-driven batch tile size -------------------------------
    vmem_limit = _default_vmem_limit()
    resident_bytes = 2 * (Dp * Hep + Hep * Ep + Ep * 2 * Ep + Ep * Hdp + Hdp * Dp) \
        + 4 * (Hep + Ep + 2 * Ep + Hdp + Dp)
    resident_bytes *= 2  # assume double-buffered residents (worst case)
    # Streamed (double-buffered) bf16 rows + f32/bf16 activation temporaries.
    bytes_per_row = (
        2 * (Dp * 2 + Ep * 2 + (Ep + Dp) * 2)
        + 4 * (Hep + Ep + 2 * Ep + Hdp + Dp)
        + 2 * (Hep + Ep + Ep + Hdp)
    )
    avail = int(vmem_limit * 0.75) - resident_bytes - 2 * SUBLANE * LANE * 4
    tb_budget = max(SUBLANE, (avail // max(bytes_per_row, 1)) // SUBLANE * SUBLANE)
    tb_cap = _round_up(block_b, SUBLANE)
    # Keep >= 2 tiles so v7x's second TensorCore gets work (when B allows it).
    tb_half = max(SUBLANE, _round_up(_cdiv(B, 2), SUBLANE))
    TB = min(tb_budget, tb_cap, tb_half, _round_up(B, SUBLANE))
    Bp = _round_up(B, TB)
    grid_len = Bp // TB
    # TODO(synk): if the resident weights (ew1/dw2 for very large D) exceed the
    # VMEM budget, stream them with a K grid axis / emit_pipeline instead of
    # keeping every weight resident.

    # ---- Streamed operands (bf16), zero-padded ----------------------------
    x_p = _pad2d(x.astype(bf16), Bp, Dp)
    eps_p = _pad2d(eps.astype(bf16), Bp, Ep)

    # ---- Resident weights (bf16) / biases (f32), zero-padded --------------
    ew1_p = _pad2d(ew1.astype(bf16), Dp, Hep)
    eb1_p = _pad2d(eb1.astype(f32).reshape(1, -1), 1, Hep)
    ew2_p = _pad2d(ew2.astype(bf16), Hep, Ep)
    eb2_p = _pad2d(eb2.astype(f32).reshape(1, -1), 1, Ep)
    # Fused latent heads: [mean | logvar] in one (Ep, 2*Ep) weight.
    wml_p = jnp.concatenate(
        [_pad2d(wm.astype(bf16), Ep, Ep), _pad2d(wv.astype(bf16), Ep, Ep)], axis=1)
    bml_p = jnp.concatenate(
        [_pad2d(bm.astype(f32).reshape(1, -1), 1, Ep),
         _pad2d(bv.astype(f32).reshape(1, -1), 1, Ep)], axis=1)
    dw1_p = _pad2d(dw1.astype(bf16), Ep, Hdp)
    db1_p = _pad2d(db1.astype(f32).reshape(1, -1), 1, Hdp)
    dw2_p = _pad2d(dw2.astype(bf16), Hdp, Dp)
    db2_p = _pad2d(db2.astype(f32).reshape(1, -1), 1, Dp)

    # ---- Kernel (closure over static B / Ep / TB) --------------------------
    def kernel(x_ref, eps_ref,
               ew1_ref, eb1_ref, ew2_ref, eb2_ref,
               wml_ref, bml_ref, dw1_ref, db1_ref, dw2_ref, db2_ref,
               out_ref, part_ref):
        xb = x_ref[...]                                              # (TB, Dp) bf16
        # Encoder: Linear -> ReLU -> Linear -> ReLU
        t = jnp.dot(xb, ew1_ref[...], preferred_element_type=f32)
        t = jnp.maximum(t + eb1_ref[...], 0.0)
        h = jnp.dot(t.astype(bf16), ew2_ref[...], preferred_element_type=f32)
        h = jnp.maximum(h + eb2_ref[...], 0.0)

        # Fused latent heads: [mean | logvar] in one MXU pass.
        ml = jnp.dot(h.astype(bf16), wml_ref[...],
                     preferred_element_type=f32) + bml_ref[...]
        mean = ml[:, :Ep]
        logvar = ml[:, Ep:]

        # Reparameterize: z = mean + eps * exp(0.5 * logvar)  (EUP exp, f32)
        z = mean + eps_ref[...].astype(f32) * jnp.exp(0.5 * logvar)

        # Decoder: Linear -> ReLU -> Linear -> ReLU
        t2 = jnp.dot(z.astype(bf16), dw1_ref[...], preferred_element_type=f32)
        t2 = jnp.maximum(t2 + db1_ref[...], 0.0)
        recon = jnp.dot(t2.astype(bf16), dw2_ref[...], preferred_element_type=f32)
        recon = jnp.maximum(recon + db2_ref[...], 0.0)

        # Packed bf16 output slab: [h | recon] -> single lane-dense store.
        out_ref[:, :Ep] = h.astype(out_ref.dtype)
        out_ref[:, Ep:] = recon.astype(out_ref.dtype)

        # Fused loss partials (padded batch rows masked out; padded feature
        # columns contribute exactly zero by construction).
        row = (pl.program_id(0) * TB
               + jax.lax.broadcasted_iota(jnp.int32, (TB, 1), 0))
        valid = row < B                                              # (TB, 1)
        diff = xb.astype(f32) - recon
        sse = jnp.sum(jnp.where(valid, diff * diff, 0.0))
        kl_terms = 1.0 + logvar - mean * mean - jnp.exp(logvar)
        kl = jnp.sum(jnp.where(valid, kl_terms, 0.0))
        lane = jax.lax.broadcasted_iota(jnp.int32, (SUBLANE, LANE), 1)
        tile = jnp.where(lane == 0, sse, jnp.where(lane == 1, kl, 0.0))
        part_ref[...] = tile[None].astype(f32)

    # ---- Specs -------------------------------------------------------------
    def tile_spec(cols):                       # streamed over batch tiles
        return pl.BlockSpec((TB, cols), lambda i: (i, 0))

    def make_in_specs(weight_pipeline_mode):
        def resident(rows, cols):              # held in VMEM across all tiles
            if weight_pipeline_mode is None:
                return pl.BlockSpec((rows, cols), lambda i: (0, 0))
            return pl.BlockSpec((rows, cols), lambda i: (0, 0),
                                pipeline_mode=weight_pipeline_mode)
        return [
            tile_spec(Dp),                     # x
            tile_spec(Ep),                     # eps
            resident(Dp, Hep), resident(1, Hep),       # ew1, eb1
            resident(Hep, Ep), resident(1, Ep),        # ew2, eb2
            resident(Ep, 2 * Ep), resident(1, 2 * Ep),  # wml, bml (fused heads)
            resident(Ep, Hdp), resident(1, Hdp),       # dw1, db1
            resident(Hdp, Dp), resident(1, Dp),        # dw2, db2
        ]

    out_specs = [
        pl.BlockSpec((TB, Ep + Dp), lambda i: (i, 0)),        # [h | recon] bf16
        pl.BlockSpec((1, SUBLANE, LANE), lambda i: (i, 0, 0)),  # loss partials
    ]
    out_shape = [
        jax.ShapeDtypeStruct((Bp, Ep + Dp), bf16),
        jax.ShapeDtypeStruct((grid_len, SUBLANE, LANE), f32),
    ]
    operands = (x_p, eps_p, ew1_p, eb1_p, ew2_p, eb2_p, wml_p, bml_p,
                dw1_p, db1_p, dw2_p, db2_p)

    def run(weight_pipeline_mode):
        return pl.pallas_call(
            kernel,
            out_shape=out_shape,
            grid_spec=pltpu.PrefetchScalarGridSpec(
                num_scalar_prefetch=0,
                grid=(grid_len,),
                in_specs=make_in_specs(weight_pipeline_mode),
                out_specs=out_specs,
            ),
            compiler_params=pltpu.CompilerParams(
                dimension_semantics=("parallel",),
                vmem_limit_bytes=vmem_limit,
            ),
        )(*operands)

    try:
        packed, parts = run(pl.Buffered(1))    # single-buffer resident weights
    except Exception:
        # Fallback: this jax build rejects Buffered(1); default double-buffering
        # is functionally identical (just uses more VMEM).
        packed, parts = run(None)

    # ---- Unpack + finish the tiny scalar combine in JAX --------------------
    h = packed[:B, :E].astype(f32)
    x_recon = packed[:B, Ep:Ep + D].astype(f32)
    sse = jnp.sum(parts[:, 0, 0])
    kl_sum = jnp.sum(parts[:, 0, 1])
    recon_loss = sse / (B * D)
    kl_loss = -0.5 * kl_sum
    loss = recon_loss + kl_loss
    return h, x_recon, loss


def init_vae_params(key, input_size, n_embeddings, dtype=jnp.float32):
    """PyTorch nn.Linear default init: U(-1/sqrt(fan_in), 1/sqrt(fan_in)).
    Weights are stored transposed, i.e. (in_features, out_features)."""
    he = input_size // 2
    hd = input_size * 2
    ks = jax.random.split(key, 12)

    def linear(kw, kb, fan_in, fan_out):
        bound = 1.0 / math.sqrt(fan_in)
        w = jax.random.uniform(kw, (fan_in, fan_out), dtype, -bound, bound)
        b = jax.random.uniform(kb, (fan_out,), dtype, -bound, bound)
        return w, b

    ew1, eb1 = linear(ks[0], ks[1], input_size, he)
    ew2, eb2 = linear(ks[2], ks[3], he, n_embeddings)
    wm, bm = linear(ks[4], ks[5], n_embeddings, n_embeddings)
    wv, bv = linear(ks[6], ks[7], n_embeddings, n_embeddings)
    dw1, db1 = linear(ks[8], ks[9], n_embeddings, hd)
    dw2, db2 = linear(ks[10], ks[11], hd, input_size)
    return (ew1, eb1, ew2, eb2, wm, bm, wv, bv, dw1, db1, dw2, db2)


def vae_reference(x, eps, params):
    """Pure-JAX reference mirroring the kernel's bf16-operand / f32-accum math."""
    (ew1, eb1, ew2, eb2, wm, bm, wv, bv, dw1, db1, dw2, db2) = params
    f32, bf16 = jnp.float32, jnp.bfloat16

    def lin(a, w, b):
        return jnp.dot(a.astype(bf16), w.astype(bf16),
                       preferred_element_type=f32) + b.astype(f32)

    t = jnp.maximum(lin(x, ew1, eb1), 0.0)
    h = jnp.maximum(lin(t, ew2, eb2), 0.0)
    mean = lin(h, wm, bm)
    logvar = lin(h, wv, bv)
    z = mean + eps.astype(f32) * jnp.exp(0.5 * logvar)
    t2 = jnp.maximum(lin(z, dw1, db1), 0.0)
    x_recon = jnp.maximum(lin(t2, dw2, db2), 0.0)
    x_s = x.astype(bf16).astype(f32)   # kernel streams x as bf16
    recon_loss = jnp.mean((x_s - x_recon) ** 2)
    kl_loss = -0.5 * jnp.sum(1.0 + logvar - mean ** 2 - jnp.exp(logvar))
    return h, x_recon, recon_loss + kl_loss


if __name__ == "__main__":
    key = jax.random.PRNGKey(0)
    kx, kp, ke = jax.random.split(key, 3)

    batch = 8
    input_size = 32
    n_embeddings = 16

    x = jax.random.normal(kx, (batch, input_size), jnp.float32)
    # torch.randn_like noise is supplied explicitly so the run is deterministic.
    eps = jax.random.normal(ke, (batch, n_embeddings), jnp.float32)
    params = init_vae_params(kp, input_size, n_embeddings)

    h, x_recon, loss = vae_forward(x, eps, params)
    h, x_recon, loss = jax.block_until_ready((h, x_recon, loss))

    h_ref, recon_ref, loss_ref = vae_reference(x, eps, params)

    assert h.shape == (batch, n_embeddings)
    assert x_recon.shape == (batch, input_size)
    assert jnp.allclose(h, h_ref, atol=2e-2, rtol=2e-2)
    assert jnp.allclose(x_recon, recon_ref, atol=2e-2, rtol=2e-2)
    assert jnp.allclose(loss, loss_ref, atol=2e-2, rtol=2e-2)

    print("KERNEL_OK")
</pallas_src>

<mosaic_0001>
module attributes {stable_mosaic.version = 11 : i64} {
  func.func @kernel(%arg0: i32, %arg1: memref<8x128xbf16, #tpu.memory_space<vmem>>, %arg2: memref<8x128xbf16, #tpu.memory_space<vmem>>, %arg3: memref<128x128xbf16, #tpu.memory_space<vmem>>, %arg4: memref<1x128xf32, #tpu.memory_space<vmem>>, %arg5: memref<128x128xbf16, #tpu.memory_space<vmem>>, %arg6: memref<1x128xf32, #tpu.memory_space<vmem>>, %arg7: memref<128x256xbf16, #tpu.memory_space<vmem>>, %arg8: memref<1x256xf32, #tpu.memory_space<vmem>>, %arg9: memref<128x128xbf16, #tpu.memory_space<vmem>>, %arg10: memref<1x128xf32, #tpu.memory_space<vmem>>, %arg11: memref<128x128xbf16, #tpu.memory_space<vmem>>, %arg12: memref<1x128xf32, #tpu.memory_space<vmem>>, %arg13: memref<8x256xbf16, #tpu.memory_space<vmem>>, %arg14: memref<1x8x128xf32, #tpu.memory_space<vmem>>) attributes {dimension_semantics = [#tpu.dimension_semantics<parallel>], iteration_bounds = array<i64: 1>, scalar_prefetch = 0 : i64, scratch_operands = 0 : i64, tpu.core_type = #tpu.core_type<tc>, window_params = [{transform_indices = @transform_0, window_bounds = array<i64: 8, 128>}, {transform_indices = @transform_1, window_bounds = array<i64: 8, 128>}, {pipeline_mode = #tpu.pipeline_mode<synchronous>, transform_indices = @transform_2, window_bounds = array<i64: 128, 128>}, {pipeline_mode = #tpu.pipeline_mode<synchronous>, transform_indices = @transform_3, window_bounds = array<i64: 1, 128>}, {pipeline_mode = #tpu.pipeline_mode<synchronous>, transform_indices = @transform_4, window_bounds = array<i64: 128, 128>}, {pipeline_mode = #tpu.pipeline_mode<synchronous>, transform_indices = @transform_5, window_bounds = array<i64: 1, 128>}, {pipeline_mode = #tpu.pipeline_mode<synchronous>, transform_indices = @transform_6, window_bounds = array<i64: 128, 256>}, {pipeline_mode = #tpu.pipeline_mode<synchronous>, transform_indices = @transform_7, window_bounds = array<i64: 1, 256>}, {pipeline_mode = #tpu.pipeline_mode<synchronous>, transform_indices = @transform_8, window_bounds = array<i64: 128, 128>}, {pipeline_mode = #tpu.pipeline_mode<synchronous>, transform_indices = @transform_9, window_bounds = array<i64: 1, 128>}, {pipeline_mode = #tpu.pipeline_mode<synchronous>, transform_indices = @transform_10, window_bounds = array<i64: 128, 128>}, {pipeline_mode = #tpu.pipeline_mode<synchronous>, transform_indices = @transform_11, window_bounds = array<i64: 1, 128>}, {transform_indices = @transform_12, window_bounds = array<i64: 8, 256>}, {transform_indices = @transform_13, window_bounds = array<i64: 1, 8, 128>}]} {
    %c0 = arith.constant 0 : index
    %c0_0 = arith.constant 0 : index
    %0 = vector.load %arg1[%c0, %c0_0] : memref<8x128xbf16, #tpu.memory_space<vmem>>, vector<8x128xbf16>
    %c0_1 = arith.constant 0 : index
    %c0_2 = arith.constant 0 : index
    %1 = vector.load %arg3[%c0_1, %c0_2] : memref<128x128xbf16, #tpu.memory_space<vmem>>, vector<128x128xbf16>
    %cst = arith.constant dense<0.000000e+00> : vector<8x128xf32>
    %2 = tpu.matmul %0, %1, %cst {dimension_numbers = #tpu.dot_dimension_numbers<[1], [0], [0], [1], [0, 0, 1, 1], [], []>} : vector<8x128xbf16>, vector<128x128xbf16>, vector<8x128xf32> -> vector<8x128xf32>
    %c0_3 = arith.constant 0 : index
    %c0_4 = arith.constant 0 : index
    %3 = vector.load %arg4[%c0_3, %c0_4] : memref<1x128xf32, #tpu.memory_space<vmem>>, vector<1x128xf32>
    %4 = vector.broadcast %3 : vector<1x128xf32> to vector<8x128xf32>
    %5 = arith.addf %2, %4 : vector<8x128xf32>
    %cst_5 = arith.constant 0.000000e+00 : f32
    %6 = vector.broadcast %cst_5 : f32 to vector<8x128xf32>
    %7 = arith.maximumf %5, %6 : vector<8x128xf32>
    %8 = arith.truncf %7 : vector<8x128xf32> to vector<8x128xbf16>
    %c0_6 = arith.constant 0 : index
    %c0_7 = arith.constant 0 : index
    %9 = vector.load %arg5[%c0_6, %c0_7] : memref<128x128xbf16, #tpu.memory_space<vmem>>, vector<128x128xbf16>
    %cst_8 = arith.constant dense<0.000000e+00> : vector<8x128xf32>
    %10 = tpu.matmul %8, %9, %cst_8 {dimension_numbers = #tpu.dot_dimension_numbers<[1], [0], [0], [1], [0, 0, 1, 1], [], []>} : vector<8x128xbf16>, vector<128x128xbf16>, vector<8x128xf32> -> vector<8x128xf32>
    %c0_9 = arith.constant 0 : index
    %c0_10 = arith.constant 0 : index
    %11 = vector.load %arg6[%c0_9, %c0_10] : memref<1x128xf32, #tpu.memory_space<vmem>>, vector<1x128xf32>
    %12 = vector.broadcast %11 : vector<1x128xf32> to vector<8x128xf32>
    %13 = arith.addf %10, %12 : vector<8x128xf32>
    %cst_11 = arith.constant 0.000000e+00 : f32
    %14 = vector.broadcast %cst_11 : f32 to vector<8x128xf32>
    %15 = arith.maximumf %13, %14 : vector<8x128xf32>
    %16 = arith.truncf %15 : vector<8x128xf32> to vector<8x128xbf16>
    %c0_12 = arith.constant 0 : index
    %c0_13 = arith.constant 0 : index
    %17 = vector.load %arg7[%c0_12, %c0_13] : memref<128x256xbf16, #tpu.memory_space<vmem>>, vector<128x256xbf16>
    %cst_14 = arith.constant dense<0.000000e+00> : vector<8x256xf32>
    %18 = tpu.matmul %16, %17, %cst_14 {dimension_numbers = #tpu.dot_dimension_numbers<[1], [0], [0], [1], [0, 0, 1, 1], [], []>} : vector<8x128xbf16>, vector<128x256xbf16>, vector<8x256xf32> -> vector<8x256xf32>
    %c0_15 = arith.constant 0 : index
    %c0_16 = arith.constant 0 : index
    %19 = vector.load %arg8[%c0_15, %c0_16] : memref<1x256xf32, #tpu.memory_space<vmem>>, vector<1x256xf32>
    %20 = vector.broadcast %19 : vector<1x256xf32> to vector<8x256xf32>
    %21 = arith.addf %18, %20 : vector<8x256xf32>
    %22 = vector.extract_strided_slice %21 {offsets = [0, 0], sizes = [8, 128], strides = [1, 1]} : vector<8x256xf32> to vector<8x128xf32>
    %23 = vector.extract_strided_slice %21 {offsets = [0, 128], sizes = [8, 128], strides = [1, 1]} : vector<8x256xf32> to vector<8x128xf32>
    %c0_17 = arith.constant 0 : index
    %c0_18 = arith.constant 0 : index
    %24 = vector.load %arg2[%c0_17, %c0_18] : memref<8x128xbf16, #tpu.memory_space<vmem>>, vector<8x128xbf16>
    %25 = arith.extf %24 : vector<8x128xbf16> to vector<8x128xf32>
    %cst_19 = arith.constant 5.000000e-01 : f32
    %26 = vector.broadcast %cst_19 : f32 to vector<8x128xf32>
    %27 = arith.mulf %26, %23 : vector<8x128xf32>
    %28 = math.exp %27 : vector<8x128xf32>
    %29 = arith.mulf %25, %28 : vector<8x128xf32>
    %30 = arith.addf %22, %29 : vector<8x128xf32>
    %31 = arith.truncf %30 : vector<8x128xf32> to vector<8x128xbf16>
    %c0_20 = arith.constant 0 : index
    %c0_21 = arith.constant 0 : index
    %32 = vector.load %arg9[%c0_20, %c0_21] : memref<128x128xbf16, #tpu.memory_space<vmem>>, vector<128x128xbf16>
    %cst_22 = arith.constant dense<0.000000e+00> : vector<8x128xf32>
    %33 = tpu.matmul %31, %32, %cst_22 {dimension_numbers = #tpu.dot_dimension_numbers<[1], [0], [0], [1], [0, 0, 1, 1], [], []>} : vector<8x128xbf16>, vector<128x128xbf16>, vector<8x128xf32> -> vector<8x128xf32>
    %c0_23 = arith.constant 0 : index
    %c0_24 = arith.constant 0 : index
    %34 = vector.load %arg10[%c0_23, %c0_24] : memref<1x128xf32, #tpu.memory_space<vmem>>, vector<1x128xf32>
    %35 = vector.broadcast %34 : vector<1x128xf32> to vector<8x128xf32>
    %36 = arith.addf %33, %35 : vector<8x128xf32>
    %cst_25 = arith.constant 0.000000e+00 : f32
    %37 = vector.broadcast %cst_25 : f32 to vector<8x128xf32>
    %38 = arith.maximumf %36, %37 : vector<8x128xf32>
    %39 = arith.truncf %38 : vector<8x128xf32> to vector<8x128xbf16>
    %c0_26 = arith.constant 0 : index
    %c0_27 = arith.constant 0 : index
    %40 = vector.load %arg11[%c0_26, %c0_27] : memref<128x128xbf16, #tpu.memory_space<vmem>>, vector<128x128xbf16>
    %cst_28 = arith.constant dense<0.000000e+00> : vector<8x128xf32>
    %41 = tpu.matmul %39, %40, %cst_28 {dimension_numbers = #tpu.dot_dimension_numbers<[1], [0], [0], [1], [0, 0, 1, 1], [], []>} : vector<8x128xbf16>, vector<128x128xbf16>, vector<8x128xf32> -> vector<8x128xf32>
    %c0_29 = arith.constant 0 : index
    %c0_30 = arith.constant 0 : index
    %42 = vector.load %arg12[%c0_29, %c0_30] : memref<1x128xf32, #tpu.memory_space<vmem>>, vector<1x128xf32>
    %43 = vector.broadcast %42 : vector<1x128xf32> to vector<8x128xf32>
    %44 = arith.addf %41, %43 : vector<8x128xf32>
    %cst_31 = arith.constant 0.000000e+00 : f32
    %45 = vector.broadcast %cst_31 : f32 to vector<8x128xf32>
    %46 = arith.maximumf %44, %45 : vector<8x128xf32>
    %47 = arith.truncf %15 : vector<8x128xf32> to vector<8x128xbf16>
    %c0_32 = arith.constant 0 : index
    %c0_33 = arith.constant 0 : index
    %48 = vector.load %arg13[%c0_32, %c0_33] : memref<8x256xbf16, #tpu.memory_space<vmem>>, vector<8x128xbf16>
    tpu.vector_store %arg13[%c0_32, %c0_33], %47 {strides = array<i32>} : memref<8x256xbf16, #tpu.memory_space<vmem>>, vector<8x128xbf16>,
    %49 = arith.truncf %46 : vector<8x128xf32> to vector<8x128xbf16>
    %c0_34 = arith.constant 0 : index
    %c128 = arith.constant 128 : index
    %50 = vector.load %arg13[%c0_34, %c128] : memref<8x256xbf16, #tpu.memory_space<vmem>>, vector<8x128xbf16>
    tpu.vector_store %arg13[%c0_34, %c128], %49 {strides = array<i32>} : memref<8x256xbf16, #tpu.memory_space<vmem>>, vector<8x128xbf16>,
    %c8_i32 = arith.constant 8 : i32
    %51 = arith.muli %arg0, %c8_i32 : i32
    %52 = tpu.iota {dimensions = array<i32: 0>} : vector<8x1xi32>
    %53 = vector.broadcast %51 : i32 to vector<8x1xi32>
    %54 = arith.addi %53, %52 : vector<8x1xi32>
    %c8_i32_35 = arith.constant 8 : i32
    %55 = vector.broadcast %c8_i32_35 : i32 to vector<8x1xi32>
    %56 = arith.cmpi slt, %54, %55 : vector<8x1xi32>
    %57 = arith.extf %0 : vector<8x128xbf16> to vector<8x128xf32>
    %58 = arith.subf %57, %46 : vector<8x128xf32>
    %59 = arith.mulf %58, %58 : vector<8x128xf32>
    %cst_36 = arith.constant 0.000000e+00 : f32
    %60 = vector.shape_cast %56 : vector<8x1xi1> to vector<8x1xi1>
    %61 = vector.broadcast %60 : vector<8x1xi1> to vector<8x128xi1>
    %62 = vector.broadcast %cst_36 : f32 to vector<8x128xf32>
    %63 = arith.select %61, %59, %62 : vector<8x128xi1>, vector<8x128xf32>
    %64 = vector.shape_cast %63 : vector<8x128xf32> to vector<1x8x128xf32>
    %cst_37 = arith.constant dense<0.000000e+00> : vector<1xf32>
    %65 = vector.multi_reduction <add>, %64, %cst_37 [1, 2] : vector<1x8x128xf32> to vector<1xf32>
    %66 = vector.shape_cast %65 : vector<1xf32> to vector<1x1x1xf32>
    %67 = vector.extract %66[0, 0, 0] : f32 from vector<1x1x1xf32>
    %cst_38 = arith.constant 1.000000e+00 : f32
    %68 = vector.broadcast %cst_38 : f32 to vector<8x128xf32>
    %69 = arith.addf %68, %23 : vector<8x128xf32>
    %70 = arith.mulf %22, %22 : vector<8x128xf32>
    %71 = arith.subf %69, %70 : vector<8x128xf32>
    %72 = math.exp %23 : vector<8x128xf32>
    %73 = arith.subf %71, %72 : vector<8x128xf32>
    %cst_39 = arith.constant 0.000000e+00 : f32
    %74 = vector.shape_cast %56 : vector<8x1xi1> to vector<8x1xi1>
    %75 = vector.broadcast %74 : vector<8x1xi1> to vector<8x128xi1>
    %76 = vector.broadcast %cst_39 : f32 to vector<8x128xf32>
    %77 = arith.select %75, %73, %76 : vector<8x128xi1>, vector<8x128xf32>
    %78 = vector.shape_cast %77 : vector<8x128xf32> to vector<1x8x128xf32>
    %cst_40 = arith.constant dense<0.000000e+00> : vector<1xf32>
    %79 = vector.multi_reduction <add>, %78, %cst_40 [1, 2] : vector<1x8x128xf32> to vector<1xf32>
    %80 = vector.shape_cast %79 : vector<1xf32> to vector<1x1x1xf32>
    %81 = vector.extract %80[0, 0, 0] : f32 from vector<1x1x1xf32>
    %82 = tpu.iota {dimensions = array<i32: 1>} : vector<8x128xi32>
    %c0_i32 = arith.constant 0 : i32
    %83 = vector.broadcast %c0_i32 : i32 to vector<8x128xi32>
    %84 = arith.cmpi eq, %82, %83 : vector<8x128xi32>
    %c1_i32 = arith.constant 1 : i32
    %85 = vector.broadcast %c1_i32 : i32 to vector<8x128xi32>
    %86 = arith.cmpi eq, %82, %85 : vector<8x128xi32>
    %cst_41 = arith.constant 0.000000e+00 : f32
    %87 = vector.broadcast %81 : f32 to vector<8x128xf32>
    %88 = vector.broadcast %cst_41 : f32 to vector<8x128xf32>
    %89 = arith.select %86, %87, %88 : vector<8x128xi1>, vector<8x128xf32>
    %90 = vector.broadcast %67 : f32 to vector<8x128xf32>
    %91 = arith.select %84, %90, %89 : vector<8x128xi1>, vector<8x128xf32>
    %92 = vector.shape_cast %91 : vector<8x128xf32> to vector<1x8x128xf32>
    %c0_42 = arith.constant 0 : index
    %c0_43 = arith.constant 0 : index
    %c0_44 = arith.constant 0 : index
    %93 = vector.load %arg14[%c0_42, %c0_43, %c0_44] : memref<1x8x128xf32, #tpu.memory_space<vmem>>, vector<1x8x128xf32>
    tpu.vector_store %arg14[%c0_42, %c0_43, %c0_44], %92 {strides = array<i32>} : memref<1x8x128xf32, #tpu.memory_space<vmem>>, vector<1x8x128xf32>,
    return
  }
  func.func @transform_0(%arg0: i32) -> (i32, i32) {
    %c0_i32 = arith.constant 0 : i32
    %c0_i32_0 = arith.constant 0 : i32
    return %arg0, %c0_i32 : i32, i32
  }
  func.func @transform_1(%arg0: i32) -> (i32, i32) {
    %c0_i32 = arith.constant 0 : i32
    %c0_i32_0 = arith.constant 0 : i32
    return %arg0, %c0_i32 : i32, i32
  }
  func.func @transform_2(%arg0: i32) -> (i32, i32) {
    %c0_i32 = arith.constant 0 : i32
    %c0_i32_0 = arith.constant 0 : i32
    %c0_i32_1 = arith.constant 0 : i32
    return %c0_i32, %c0_i32_0 : i32, i32
  }
  func.func @transform_3(%arg0: i32) -> (i32, i32) {
    %c0_i32 = arith.constant 0 : i32
    %c0_i32_0 = arith.constant 0 : i32
    %c0_i32_1 = arith.constant 0 : i32
    return %c0_i32, %c0_i32_0 : i32, i32
  }
  func.func @transform_4(%arg0: i32) -> (i32, i32) {
    %c0_i32 = arith.constant 0 : i32
    %c0_i32_0 = arith.constant 0 : i32
    %c0_i32_1 = arith.constant 0 : i32
    return %c0_i32, %c0_i32_0 : i32, i32
  }
  func.func @transform_5(%arg0: i32) -> (i32, i32) {
    %c0_i32 = arith.constant 0 : i32
    %c0_i32_0 = arith.constant 0 : i32
    %c0_i32_1 = arith.constant 0 : i32
    return %c0_i32, %c0_i32_0 : i32, i32
  }
  func.func @transform_6(%arg0: i32) -> (i32, i32) {
    %c0_i32 = arith.constant 0 : i32
    %c0_i32_0 = arith.constant 0 : i32
    %c0_i32_1 = arith.constant 0 : i32
    return %c0_i32, %c0_i32_0 : i32, i32
  }
  func.func @transform_7(%arg0: i32) -> (i32, i32) {
    %c0_i32 = arith.constant 0 : i32
    %c0_i32_0 = arith.constant 0 : i32
    %c0_i32_1 = arith.constant 0 : i32
    return %c0_i32, %c0_i32_0 : i32, i32
  }
  func.func @transform_8(%arg0: i32) -> (i32, i32) {
    %c0_i32 = arith.constant 0 : i32
    %c0_i32_0 = arith.constant 0 : i32
    %c0_i32_1 = arith.constant 0 : i32
    return %c0_i32, %c0_i32_0 : i32, i32
  }
  func.func @transform_9(%arg0: i32) -> (i32, i32) {
    %c0_i32 = arith.constant 0 : i32
    %c0_i32_0 = arith.constant 0 : i32
    %c0_i32_1 = arith.constant 0 : i32
    return %c0_i32, %c0_i32_0 : i32, i32
  }
  func.func @transform_10(%arg0: i32) -> (i32, i32) {
    %c0_i32 = arith.constant 0 : i32
    %c0_i32_0 = arith.constant 0 : i32
    %c0_i32_1 = arith.constant 0 : i32
    return %c0_i32, %c0_i32_0 : i32, i32
  }
  func.func @transform_11(%arg0: i32) -> (i32, i32) {
    %c0_i32 = arith.constant 0 : i32
    %c0_i32_0 = arith.constant 0 : i32
    %c0_i32_1 = arith.constant 0 : i32
    return %c0_i32, %c0_i32_0 : i32, i32
  }
  func.func @transform_12(%arg0: i32) -> (i32, i32) {
    %c0_i32 = arith.constant 0 : i32
    %c0_i32_0 = arith.constant 0 : i32
    return %arg0, %c0_i32 : i32, i32
  }
  func.func @transform_13(%arg0: i32) -> (i32, i32, i32) {
    %c0_i32 = arith.constant 0 : i32
    %c0_i32_0 = arith.constant 0 : i32
    %c0_i32_1 = arith.constant 0 : i32
    return %arg0, %c0_i32, %c0_i32_0 : i32, i32, i32
  }
}

module attributes {stable_mosaic.version = 11 : i64} {
  func.func @kernel(%arg0: i32, %arg1: memref<8x128xbf16, #tpu.memory_space<vmem>>, %arg2: memref<8x128xbf16, #tpu.memory_space<vmem>>, %arg3: memref<128x128xbf16, #tpu.memory_space<vmem>>, %arg4: memref<1x128xf32, #tpu.memory_space<vmem>>, %arg5: memref<128x128xbf16, #tpu.memory_space<vmem>>, %arg6: memref<1x128xf32, #tpu.memory_space<vmem>>, %arg7: memref<128x256xbf16, #tpu.memory_space<vmem>>, %arg8: memref<1x256xf32, #tpu.memory_space<vmem>>, %arg9: memref<128x128xbf16, #tpu.memory_space<vmem>>, %arg10: memref<1x128xf32, #tpu.memory_space<vmem>>, %arg11: memref<128x128xbf16, #tpu.memory_space<vmem>>, %arg12: memref<1x128xf32, #tpu.memory_space<vmem>>, %arg13: memref<8x256xbf16, #tpu.memory_space<vmem>>, %arg14: memref<1x8x128xf32, #tpu.memory_space<vmem>>) attributes {dimension_semantics = [#tpu.dimension_semantics<parallel>], iteration_bounds = array<i64: 1>, scalar_prefetch = 0 : i64, scratch_operands = 0 : i64, tpu.core_type = #tpu.core_type<tc>, window_params = [{transform_indices = @transform_0, window_bounds = array<i64: 8, 128>}, {transform_indices = @transform_1, window_bounds = array<i64: 8, 128>}, {pipeline_mode = #tpu.pipeline_mode<synchronous>, transform_indices = @transform_2, window_bounds = array<i64: 128, 128>}, {pipeline_mode = #tpu.pipeline_mode<synchronous>, transform_indices = @transform_3, window_bounds = array<i64: 1, 128>}, {pipeline_mode = #tpu.pipeline_mode<synchronous>, transform_indices = @transform_4, window_bounds = array<i64: 128, 128>}, {pipeline_mode = #tpu.pipeline_mode<synchronous>, transform_indices = @transform_5, window_bounds = array<i64: 1, 128>}, {pipeline_mode = #tpu.pipeline_mode<synchronous>, transform_indices = @transform_6, window_bounds = array<i64: 128, 256>}, {pipeline_mode = #tpu.pipeline_mode<synchronous>, transform_indices = @transform_7, window_bounds = array<i64: 1, 256>}, {pipeline_mode = #tpu.pipeline_mode<synchronous>, transform_indices = @transform_8, window_bounds = array<i64: 128, 128>}, {pipeline_mode = #tpu.pipeline_mode<synchronous>, transform_indices = @transform_9, window_bounds = array<i64: 1, 128>}, {pipeline_mode = #tpu.pipeline_mode<synchronous>, transform_indices = @transform_10, window_bounds = array<i64: 128, 128>}, {pipeline_mode = #tpu.pipeline_mode<synchronous>, transform_indices = @transform_11, window_bounds = array<i64: 1, 128>}, {transform_indices = @transform_12, window_bounds = array<i64: 8, 256>}, {transform_indices = @transform_13, window_bounds = array<i64: 1, 8, 128>}]} {
    %c0 = arith.constant 0 : index
    %c0_0 = arith.constant 0 : index
    %0 = vector.load %arg1[%c0, %c0_0] : memref<8x128xbf16, #tpu.memory_space<vmem>>, vector<8x128xbf16>
    %c0_1 = arith.constant 0 : index
    %c0_2 = arith.constant 0 : index
    %1 = vector.load %arg3[%c0_1, %c0_2] : memref<128x128xbf16, #tpu.memory_space<vmem>>, vector<128x128xbf16>
    %cst = arith.constant dense<0.000000e+00> : vector<8x128xf32>
    %2 = tpu.matmul %0, %1, %cst {dimension_numbers = #tpu.dot_dimension_numbers<[1], [0], [0], [1], [0, 0, 1, 1], [], []>} : vector<8x128xbf16>, vector<128x128xbf16>, vector<8x128xf32> -> vector<8x128xf32>
    %c0_3 = arith.constant 0 : index
    %c0_4 = arith.constant 0 : index
    %3 = vector.load %arg4[%c0_3, %c0_4] : memref<1x128xf32, #tpu.memory_space<vmem>>, vector<1x128xf32>
    %4 = vector.broadcast %3 : vector<1x128xf32> to vector<8x128xf32>
    %5 = arith.addf %2, %4 : vector<8x128xf32>
    %cst_5 = arith.constant 0.000000e+00 : f32
    %6 = vector.broadcast %cst_5 : f32 to vector<8x128xf32>
    %7 = arith.maximumf %5, %6 : vector<8x128xf32>
    %8 = arith.truncf %7 : vector<8x128xf32> to vector<8x128xbf16>
    %c0_6 = arith.constant 0 : index
    %c0_7 = arith.constant 0 : index
    %9 = vector.load %arg5[%c0_6, %c0_7] : memref<128x128xbf16, #tpu.memory_space<vmem>>, vector<128x128xbf16>
    %cst_8 = arith.constant dense<0.000000e+00> : vector<8x128xf32>
    %10 = tpu.matmul %8, %9, %cst_8 {dimension_numbers = #tpu.dot_dimension_numbers<[1], [0], [0], [1], [0, 0, 1, 1], [], []>} : vector<8x128xbf16>, vector<128x128xbf16>, vector<8x128xf32> -> vector<8x128xf32>
    %c0_9 = arith.constant 0 : index
    %c0_10 = arith.constant 0 : index
    %11 = vector.load %arg6[%c0_9, %c0_10] : memref<1x128xf32, #tpu.memory_space<vmem>>, vector<1x128xf32>
    %12 = vector.broadcast %11 : vector<1x128xf32> to vector<8x128xf32>
    %13 = arith.addf %10, %12 : vector<8x128xf32>
    %cst_11 = arith.constant 0.000000e+00 : f32
    %14 = vector.broadcast %cst_11 : f32 to vector<8x128xf32>
    %15 = arith.maximumf %13, %14 : vector<8x128xf32>
    %16 = arith.truncf %15 : vector<8x128xf32> to vector<8x128xbf16>
    %c0_12 = arith.constant 0 : index
    %c0_13 = arith.constant 0 : index
    %17 = vector.load %arg7[%c0_12, %c0_13] : memref<128x256xbf16, #tpu.memory_space<vmem>>, vector<128x256xbf16>
    %cst_14 = arith.constant dense<0.000000e+00> : vector<8x256xf32>
    %18 = tpu.matmul %16, %17, %cst_14 {dimension_numbers = #tpu.dot_dimension_numbers<[1], [0], [0], [1], [0, 0, 1, 1], [], []>} : vector<8x128xbf16>, vector<128x256xbf16>, vector<8x256xf32> -> vector<8x256xf32>
    %c0_15 = arith.constant 0 : index
    %c0_16 = arith.constant 0 : index
    %19 = vector.load %arg8[%c0_15, %c0_16] : memref<1x256xf32, #tpu.memory_space<vmem>>, vector<1x256xf32>
    %20 = vector.broadcast %19 : vector<1x256xf32> to vector<8x256xf32>
    %21 = arith.addf %18, %20 : vector<8x256xf32>
    %22 = vector.extract_strided_slice %21 {offsets = [0, 0], sizes = [8, 128], strides = [1, 1]} : vector<8x256xf32> to vector<8x128xf32>
    %23 = vector.extract_strided_slice %21 {offsets = [0, 128], sizes = [8, 128], strides = [1, 1]} : vector<8x256xf32> to vector<8x128xf32>
    %c0_17 = arith.constant 0 : index
    %c0_18 = arith.constant 0 : index
    %24 = vector.load %arg2[%c0_17, %c0_18] : memref<8x128xbf16, #tpu.memory_space<vmem>>, vector<8x128xbf16>
    %25 = arith.extf %24 : vector<8x128xbf16> to vector<8x128xf32>
    %cst_19 = arith.constant 5.000000e-01 : f32
    %26 = vector.broadcast %cst_19 : f32 to vector<8x128xf32>
    %27 = arith.mulf %26, %23 : vector<8x128xf32>
    %28 = math.exp %27 : vector<8x128xf32>
    %29 = arith.mulf %25, %28 : vector<8x128xf32>
    %30 = arith.addf %22, %29 : vector<8x128xf32>
    %31 = arith.truncf %30 : vector<8x128xf32> to vector<8x128xbf16>
    %c0_20 = arith.constant 0 : index
    %c0_21 = arith.constant 0 : index
    %32 = vector.load %arg9[%c0_20, %c0_21] : memref<128x128xbf16, #tpu.memory_space<vmem>>, vector<128x128xbf16>
    %cst_22 = arith.constant dense<0.000000e+00> : vector<8x128xf32>
    %33 = tpu.matmul %31, %32, %cst_22 {dimension_numbers = #tpu.dot_dimension_numbers<[1], [0], [0], [1], [0, 0, 1, 1], [], []>} : vector<8x128xbf16>, vector<128x128xbf16>, vector<8x128xf32> -> vector<8x128xf32>
    %c0_23 = arith.constant 0 : index
    %c0_24 = arith.constant 0 : index
    %34 = vector.load %arg10[%c0_23, %c0_24] : memref<1x128xf32, #tpu.memory_space<vmem>>, vector<1x128xf32>
    %35 = vector.broadcast %34 : vector<1x128xf32> to vector<8x128xf32>
    %36 = arith.addf %33, %35 : vector<8x128xf32>
    %cst_25 = arith.constant 0.000000e+00 : f32
    %37 = vector.broadcast %cst_25 : f32 to vector<8x128xf32>
    %38 = arith.maximumf %36, %37 : vector<8x128xf32>
    %39 = arith.truncf %38 : vector<8x128xf32> to vector<8x128xbf16>
    %c0_26 = arith.constant 0 : index
    %c0_27 = arith.constant 0 : index
    %40 = vector.load %arg11[%c0_26, %c0_27] : memref<128x128xbf16, #tpu.memory_space<vmem>>, vector<128x128xbf16>
    %cst_28 = arith.constant dense<0.000000e+00> : vector<8x128xf32>
    %41 = tpu.matmul %39, %40, %cst_28 {dimension_numbers = #tpu.dot_dimension_numbers<[1], [0], [0], [1], [0, 0, 1, 1], [], []>} : vector<8x128xbf16>, vector<128x128xbf16>, vector<8x128xf32> -> vector<8x128xf32>
    %c0_29 = arith.constant 0 : index
    %c0_30 = arith.constant 0 : index
    %42 = vector.load %arg12[%c0_29, %c0_30] : memref<1x128xf32, #tpu.memory_space<vmem>>, vector<1x128xf32>
    %43 = vector.broadcast %42 : vector<1x128xf32> to vector<8x128xf32>
    %44 = arith.addf %41, %43 : vector<8x128xf32>
    %cst_31 = arith.constant 0.000000e+00 : f32
    %45 = vector.broadcast %cst_31 : f32 to vector<8x128xf32>
    %46 = arith.maximumf %44, %45 : vector<8x128xf32>
    %47 = arith.truncf %15 : vector<8x128xf32> to vector<8x128xbf16>
    %c0_32 = arith.constant 0 : index
    %c0_33 = arith.constant 0 : index
    %48 = vector.load %arg13[%c0_32, %c0_33] : memref<8x256xbf16, #tpu.memory_space<vmem>>, vector<8x128xbf16>
    tpu.vector_store %arg13[%c0_32, %c0_33], %47 {strides = array<i32>} : memref<8x256xbf16, #tpu.memory_space<vmem>>, vector<8x128xbf16>,
    %49 = arith.truncf %46 : vector<8x128xf32> to vector<8x128xbf16>
    %c0_34 = arith.constant 0 : index
    %c128 = arith.constant 128 : index
    %50 = vector.load %arg13[%c0_34, %c128] : memref<8x256xbf16, #tpu.memory_space<vmem>>, vector<8x128xbf16>
    tpu.vector_store %arg13[%c0_34, %c128], %49 {strides = array<i32>} : memref<8x256xbf16, #tpu.memory_space<vmem>>, vector<8x128xbf16>,
    %c8_i32 = arith.constant 8 : i32
    %51 = arith.muli %arg0, %c8_i32 : i32
    %52 = tpu.iota {dimensions = array<i32: 0>} : vector<8x1xi32>
    %53 = vector.broadcast %51 : i32 to vector<8x1xi32>
    %54 = arith.addi %53, %52 : vector<8x1xi32>
    %c8_i32_35 = arith.constant 8 : i32
    %55 = vector.broadcast %c8_i32_35 : i32 to vector<8x1xi32>
    %56 = arith.cmpi slt, %54, %55 : vector<8x1xi32>
    %57 = arith.extf %0 : vector<8x128xbf16> to vector<8x128xf32>
    %58 = arith.subf %57, %46 : vector<8x128xf32>
    %59 = arith.mulf %58, %58 : vector<8x128xf32>
    %cst_36 = arith.constant 0.000000e+00 : f32
    %60 = vector.shape_cast %56 : vector<8x1xi1> to vector<8x1xi1>
    %61 = vector.broadcast %60 : vector<8x1xi1> to vector<8x128xi1>
    %62 = vector.broadcast %cst_36 : f32 to vector<8x128xf32>
    %63 = arith.select %61, %59, %62 : vector<8x128xi1>, vector<8x128xf32>
    %64 = vector.shape_cast %63 : vector<8x128xf32> to vector<1x8x128xf32>
    %cst_37 = arith.constant dense<0.000000e+00> : vector<1xf32>
    %65 = vector.multi_reduction <add>, %64, %cst_37 [1, 2] : vector<1x8x128xf32> to vector<1xf32>
    %66 = vector.shape_cast %65 : vector<1xf32> to vector<1x1x1xf32>
    %67 = vector.extract %66[0, 0, 0] : f32 from vector<1x1x1xf32>
    %cst_38 = arith.constant 1.000000e+00 : f32
    %68 = vector.broadcast %cst_38 : f32 to vector<8x128xf32>
    %69 = arith.addf %68, %23 : vector<8x128xf32>
    %70 = arith.mulf %22, %22 : vector<8x128xf32>
    %71 = arith.subf %69, %70 : vector<8x128xf32>
    %72 = math.exp %23 : vector<8x128xf32>
    %73 = arith.subf %71, %72 : vector<8x128xf32>
    %cst_39 = arith.constant 0.000000e+00 : f32
    %74 = vector.shape_cast %56 : vector<8x1xi1> to vector<8x1xi1>
    %75 = vector.broadcast %74 : vector<8x1xi1> to vector<8x128xi1>
    %76 = vector.broadcast %cst_39 : f32 to vector<8x128xf32>
    %77 = arith.select %75, %73, %76 : vector<8x128xi1>, vector<8x128xf32>
    %78 = vector.shape_cast %77 : vector<8x128xf32> to vector<1x8x128xf32>
    %cst_40 = arith.constant dense<0.000000e+00> : vector<1xf32>
    %79 = vector.multi_reduction <add>, %78, %cst_40 [1, 2] : vector<1x8x128xf32> to vector<1xf32>
    %80 = vector.shape_cast %79 : vector<1xf32> to vector<1x1x1xf32>
    %81 = vector.extract %80[0, 0, 0] : f32 from vector<1x1x1xf32>
    %82 = tpu.iota {dimensions = array<i32: 1>} : vector<8x128xi32>
    %c0_i32 = arith.constant 0 : i32
    %83 = vector.broadcast %c0_i32 : i32 to vector<8x128xi32>
    %84 = arith.cmpi eq, %82, %83 : vector<8x128xi32>
    %c1_i32 = arith.constant 1 : i32
    %85 = vector.broadcast %c1_i32 : i32 to vector<8x128xi32>
    %86 = arith.cmpi eq, %82, %85 : vector<8x128xi32>
    %cst_41 = arith.constant 0.000000e+00 : f32
    %87 = vector.broadcast %81 : f32 to vector<8x128xf32>
    %88 = vector.broadcast %cst_41 : f32 to vector<8x128xf32>
    %89 = arith.select %86, %87, %88 : vector<8x128xi1>, vector<8x128xf32>
    %90 = vector.broadcast %67 : f32 to vector<8x128xf32>
    %91 = arith.select %84, %90, %89 : vector<8x128xi1>, vector<8x128xf32>
    %92 = vector.shape_cast %91 : vector<8x128xf32> to vector<1x8x128xf32>
    %c0_42 = arith.constant 0 : index
    %c0_43 = arith.constant 0 : index
    %c0_44 = arith.constant 0 : index
    %93 = vector.load %arg14[%c0_42, %c0_43, %c0_44] : memref<1x8x128xf32, #tpu.memory_space<vmem>>, vector<1x8x128xf32>
    tpu.vector_store %arg14[%c0_42, %c0_43, %c0_44], %92 {strides = array<i32>} : memref<1x8x128xf32, #tpu.memory_space<vmem>>, vector<1x8x128xf32>,
    return
  }
  func.func @transform_0(%arg0: i32) -> (i32, i32) {
    %c0_i32 = arith.constant 0 : i32
    %c0_i32_0 = arith.constant 0 : i32
    return %arg0, %c0_i32 : i32, i32
  }
  func.func @transform_1(%arg0: i32) -> (i32, i32) {
    %c0_i32 = arith.constant 0 : i32
    %c0_i32_0 = arith.constant 0 : i32
    return %arg0, %c0_i32 : i32, i32
  }
  func.func @transform_2(%arg0: i32) -> (i32, i32) {
    %c0_i32 = arith.constant 0 : i32
    %c0_i32_0 = arith.constant 0 : i32
    %c0_i32_1 = arith.constant 0 : i32
    return %c0_i32, %c0_i32_0 : i32, i32
  }
  func.func @transform_3(%arg0: i32) -> (i32, i32) {
    %c0_i32 = arith.constant 0 : i32
    %c0_i32_0 = arith.constant 0 : i32
    %c0_i32_1 = arith.constant 0 : i32
    return %c0_i32, %c0_i32_0 : i32, i32
  }
  func.func @transform_4(%arg0: i32) -> (i32, i32) {
    %c0_i32 = arith.constant 0 : i32
    %c0_i32_0 = arith.constant 0 : i32
    %c0_i32_1 = arith.constant 0 : i32
    return %c0_i32, %c0_i32_0 : i32, i32
  }
  func.func @transform_5(%arg0: i32) -> (i32, i32) {
    %c0_i32 = arith.constant 0 : i32
    %c0_i32_0 = arith.constant 0 : i32
    %c0_i32_1 = arith.constant 0 : i32
    return %c0_i32, %c0_i32_0 : i32, i32
  }
  func.func @transform_6(%arg0: i32) -> (i32, i32) {
    %c0_i32 = arith.constant 0 : i32
    %c0_i32_0 = arith.constant 0 : i32
    %c0_i32_1 = arith.constant 0 : i32
    return %c0_i32, %c0_i32_0 : i32, i32
  }
  func.func @transform_7(%arg0: i32) -> (i32, i32) {
    %c0_i32 = arith.constant 0 : i32
    %c0_i32_0 = arith.constant 0 : i32
    %c0_i32_1 = arith.constant 0 : i32
    return %c0_i32, %c0_i32_0 : i32, i32
  }
  func.func @transform_8(%arg0: i32) -> (i32, i32) {
    %c0_i32 = arith.constant 0 : i32
    %c0_i32_0 = arith.constant 0 : i32
    %c0_i32_1 = arith.constant 0 : i32
    return %c0_i32, %c0_i32_0 : i32, i32
  }
  func.func @transform_9(%arg0: i32) -> (i32, i32) {
    %c0_i32 = arith.constant 0 : i32
    %c0_i32_0 = arith.constant 0 : i32
    %c0_i32_1 = arith.constant 0 : i32
    return %c0_i32, %c0_i32_0 : i32, i32
  }
  func.func @transform_10(%arg0: i32) -> (i32, i32) {
    %c0_i32 = arith.constant 0 : i32
    %c0_i32_0 = arith.constant 0 : i32
    %c0_i32_1 = arith.constant 0 : i32
    return %c0_i32, %c0_i32_0 : i32, i32
  }
  func.func @transform_11(%arg0: i32) -> (i32, i32) {
    %c0_i32 = arith.constant 0 : i32
    %c0_i32_0 = arith.constant 0 : i32
    %c0_i32_1 = arith.constant 0 : i32
    return %c0_i32, %c0_i32_0 : i32, i32
  }
  func.func @transform_12(%arg0: i32) -> (i32, i32) {
    %c0_i32 = arith.constant 0 : i32
    %c0_i32_0 = arith.constant 0 : i32
    return %arg0, %c0_i32 : i32, i32
  }
  func.func @transform_13(%arg0: i32) -> (i32, i32, i32) {
    %c0_i32 = arith.constant 0 : i32
    %c0_i32_0 = arith.constant 0 : i32
    %c0_i32_1 = arith.constant 0 : i32
    return %arg0, %c0_i32, %c0_i32_0 : i32, i32, i32
  }
}

</mosaic_0001>

<llo_original>
// kernel: tpu_custom_call.1
$region0: #{tpu_custom_call.1}
  #allocation0 [shape = 'u32[]', space=smem, size = 0x4, offset = 0x4, fixed_abs, tag = 'smem constant byte address 0x4 - core index']
  #allocation1 [shape = 'u32[144,128]{1,0:T(1,128)}', space=vmem, size = 0x12000, scoped, tag = 'internal scratch']
  %s0 = inlined_call_operand.hbm [shape: bf16[8,128], index: 0, kind: input, shape index: {}]
  %s1 = inlined_call_operand.hbm [shape: bf16[8,128], index: 1, kind: input, shape index: {}]
  %s2 = inlined_call_operand.hbm [shape: bf16[128,128], index: 2, kind: input, shape index: {}]
  %s3 = inlined_call_operand.vmem [shape: f32[1,128], index: 3, kind: input, shape index: {}]
  %s4 = inlined_call_operand.hbm [shape: bf16[128,128], index: 4, kind: input, shape index: {}]
  %s5 = inlined_call_operand.vmem [shape: f32[1,128], index: 5, kind: input, shape index: {}]
  %s6 = inlined_call_operand.hbm [shape: bf16[128,256], index: 6, kind: input, shape index: {}]
  %s7 = inlined_call_operand.vmem [shape: f32[1,256], index: 7, kind: input, shape index: {}]
  %s8 = inlined_call_operand.hbm [shape: bf16[128,128], index: 8, kind: input, shape index: {}]
  %s9 = inlined_call_operand.vmem [shape: f32[1,128], index: 9, kind: input, shape index: {}]
  %s10 = inlined_call_operand.hbm [shape: bf16[128,128], index: 10, kind: input, shape index: {}]
  %s11 = inlined_call_operand.vmem [shape: f32[1,128], index: 11, kind: input, shape index: {}]
  %s12 = inlined_call_operand.hbm [shape: bf16[8,256], index: 12, kind: output, shape index: {0}]
  %s13 = inlined_call_operand.hbm [shape: f32[1,8,128], index: 13, kind: output, shape index: {1}]
  %14 = xla_tuple %s12, %s13
  %s15 = sld [smem:[#allocation0]]
  $region94: #{tpu_custom_call.1} parent=0
    _
  %s17 = ssub.s32 1, %s15
  %s18 = scalar_select 0, %s17, %s15
  $region1: #{tpu_custom_call.1} parent=0
    #allocation2 [shape = 'u8[2048]{0}', space=vmem, size = 0x800, scoped, tag = 'input window, operand 0, single buffered']
    #allocation3 [shape = 's32[1]{0}', space=sflag, size = 0x4, scoped, tag = 'scoped memory for tpu_custom_call.1']
    #allocation4 [shape = 's32[1]{0}', space=sflag, size = 0x4, scoped, tag = 'scoped memory for tpu_custom_call.1']
    #allocation5 [shape = 'u8[2048]{0}', space=vmem, size = 0x800, scoped, tag = 'input window, operand 1, single buffered']
    #allocation6 [shape = 's32[1]{0}', space=sflag, size = 0x4, scoped, tag = 'scoped memory for tpu_custom_call.1']
    #allocation7 [shape = 'u8[32768]{0}', space=vmem, size = 0x8000, scoped, tag = 'input window, operand 2, single buffered']
    #allocation8 [shape = 'u8[32768]{0}', space=vmem, size = 0x8000, scoped, tag = 'input window, operand 4, single buffered']
    #allocation9 [shape = 's32[1]{0}', space=sflag, size = 0x4, scoped, tag = 'scoped memory for tpu_custom_call.1']
    #allocation10 [shape = 'u8[65536]{0}', space=vmem, size = 0x10000, scoped, tag = 'input window, operand 6, single buffered']
    #allocation11 [shape = 'u8[32768]{0}', space=vmem, size = 0x8000, scoped, tag = 'input window, operand 8, single buffered']
    #allocation12 [shape = 's32[1]{0}', space=sflag, size = 0x4, scoped, tag = 'scoped memory for tpu_custom_call.1']
    #allocation13 [shape = 'u8[32768]{0}', space=vmem, size = 0x8000, scoped, tag = 'input window, operand 10, single buffered']
    #allocation14 [shape = 'u8[4096]{0}', space=vmem, size = 0x1000, scoped, tag = 'output window, operand 0, single buffered']
    #allocation15 [shape = 'u8[4096]{0}', space=vmem, size = 0x1000, scoped, tag = 'output window, operand 1, single buffered']
    #allocation16 [shape = 's32[1]{0}', space=sflag, size = 0x4, scoped, tag = 'scoped memory for tpu_custom_call.1']
    %19 = vsyncpa [#allocation3], 0
    %20 = vsyncpa [#allocation6], 0
    %21 = vsyncpa [#allocation9], 0
    %22 = vsyncpa [#allocation12], 0
    %23 = vsyncpa [#allocation4], 0
    %24 = vsyncpa [#allocation16], 0
    // Predicated region
    $region2: #{tpu_custom_call.1} parent=1 // pred_check
      _
    $region3: #{tpu_custom_call.1} parent=1 // pred_check_branch
      %26 = sbr.rel (0) target = $region5
    $region4: #{tpu_custom_call.1} parent=1 // pred_region
      %s28 = ssub.s32 64, 64
      %29 = vsyncadd [#allocation3], %s28
      %s31 = sshll.u32 [#allocation2], 4
      %s32 = int_to_ptr.vmem [resolvable:$true] %s31
      %34 = dma.hbm_to_vmem [thread:$0]  %s0, 64, %s32, [#allocation3]
    $region5: #{tpu_custom_call.1} parent=1 // pred_fallthru
      _
    // Predicated region
    $region6: #{tpu_custom_call.1} parent=1 // pred_check
      _
    $region7: #{tpu_custom_call.1} parent=1 // pred_check_branch
      %36 = sbr.rel (0) target = $region9
    $region8: #{tpu_custom_call.1} parent=1 // pred_region
      %s38 = ssub.s32 64, 64
      %39 = vsyncadd [#allocation6], %s38
      %s41 = sshll.u32 [#allocation5], 4
      %s42 = int_to_ptr.vmem [resolvable:$true] %s41
      %44 = dma.hbm_to_vmem [thread:$0]  %s1, 64, %s42, [#allocation6]
    $region9: #{tpu_custom_call.1} parent=1 // pred_fallthru
      _
    // Predicated region
    $region10: #{tpu_custom_call.1} parent=1 // pred_check
      _
    $region11: #{tpu_custom_call.1} parent=1 // pred_check_branch
      %46 = sbr.rel (0) target = $region13
    $region12: #{tpu_custom_call.1} parent=1 // pred_region
      %s48 = ssub.s32 1024, 1024
      %49 = vsyncadd [#allocation6], %s48
      %s50 = sshll.u32 [#allocation7], 4
      %s51 = int_to_ptr.vmem [resolvable:$true] %s50
      %56 = dma.hbm_to_vmem [thread:$0]  %s2, 1024, %s51, [#allocation6], 64, 64, 4
    $region13: #{tpu_custom_call.1} parent=1 // pred_fallthru
      _
    // Predicated region
    $region14: #{tpu_custom_call.1} parent=1 // pred_check
      _
    $region15: #{tpu_custom_call.1} parent=1 // pred_check_branch
      %58 = sbr.rel (0) target = $region17
    $region16: #{tpu_custom_call.1} parent=1 // pred_region
      _
    $region17: #{tpu_custom_call.1} parent=1 // pred_fallthru
      _
    // Predicated region
    $region18: #{tpu_custom_call.1} parent=1 // pred_check
      _
    $region19: #{tpu_custom_call.1} parent=1 // pred_check_branch
      %60 = sbr.rel (0) target = $region21
    $region20: #{tpu_custom_call.1} parent=1 // pred_region
      %s62 = ssub.s32 1024, 1024
      %63 = vsyncadd [#allocation9], %s62
      %s64 = sshll.u32 [#allocation8], 4
      %s65 = int_to_ptr.vmem [resolvable:$true] %s64
      %70 = dma.hbm_to_vmem [thread:$0]  %s4, 1024, %s65, [#allocation9], 64, 64, 4
    $region21: #{tpu_custom_call.1} parent=1 // pred_fallthru
      _
    // Predicated region
    $region22: #{tpu_custom_call.1} parent=1 // pred_check
      _
    $region23: #{tpu_custom_call.1} parent=1 // pred_check_branch
      %72 = sbr.rel (0) target = $region25
    $region24: #{tpu_custom_call.1} parent=1 // pred_region
      _
    $region25: #{tpu_custom_call.1} parent=1 // pred_fallthru
      _
    // Predicated region
    $region26: #{tpu_custom_call.1} parent=1 // pred_check
      _
    $region27: #{tpu_custom_call.1} parent=1 // pred_check_branch
      %74 = sbr.rel (0) target = $region29
    $region28: #{tpu_custom_call.1} parent=1 // pred_region
      %s76 = ssub.s32 2048, 2048
      %77 = vsyncadd [#allocation9], %s76
      %s78 = sshll.u32 [#allocation10], 4
      %s79 = int_to_ptr.vmem [resolvable:$true] %s78
      %84 = dma.hbm_to_vmem [thread:$0]  %s6, 2048, %s79, [#allocation9], 128, 128, 8
    $region29: #{tpu_custom_call.1} parent=1 // pred_fallthru
      _
    // Predicated region
    $region30: #{tpu_custom_call.1} parent=1 // pred_check
      _
    $region31: #{tpu_custom_call.1} parent=1 // pred_check_branch
      %86 = sbr.rel (0) target = $region33
    $region32: #{tpu_custom_call.1} parent=1 // pred_region
      _
    $region33: #{tpu_custom_call.1} parent=1 // pred_fallthru
      _
    // Predicated region
    $region34: #{tpu_custom_call.1} parent=1 // pred_check
      _
    $region35: #{tpu_custom_call.1} parent=1 // pred_check_branch
      %88 = sbr.rel (0) target = $region37
    $region36: #{tpu_custom_call.1} parent=1 // pred_region
      %s90 = ssub.s32 1024, 1024
      %91 = vsyncadd [#allocation12], %s90
      %s92 = sshll.u32 [#allocation11], 4
      %s93 = int_to_ptr.vmem [resolvable:$true] %s92
      %98 = dma.hbm_to_vmem [thread:$0]  %s8, 1024, %s93, [#allocation12], 64, 64, 4
    $region37: #{tpu_custom_call.1} parent=1 // pred_fallthru
      _
    // Predicated region
    $region38: #{tpu_custom_call.1} parent=1 // pred_check
      _
    $region39: #{tpu_custom_call.1} parent=1 // pred_check_branch
      %100 = sbr.rel (0) target = $region41
    $region40: #{tpu_custom_call.1} parent=1 // pred_region
      _
    $region41: #{tpu_custom_call.1} parent=1 // pred_fallthru
      _
    // Predicated region
    $region42: #{tpu_custom_call.1} parent=1 // pred_check
      _
    $region43: #{tpu_custom_call.1} parent=1 // pred_check_branch
      %102 = sbr.rel (0) target = $region45
    $region44: #{tpu_custom_call.1} parent=1 // pred_region
      %s104 = ssub.s32 1024, 1024
      %105 = vsyncadd [#allocation12], %s104
      %s106 = sshll.u32 [#allocation13], 4
      %s107 = int_to_ptr.vmem [resolvable:$true] %s106
      %112 = dma.hbm_to_vmem [thread:$0]  %s10, 1024, %s107, [#allocation12], 64, 64, 4
    $region45: #{tpu_custom_call.1} parent=1 // pred_fallthru
      _
    // Predicated region
    $region46: #{tpu_custom_call.1} parent=1 // pred_check
      _
    $region47: #{tpu_custom_call.1} parent=1 // pred_check_branch
      %114 = sbr.rel (0) target = $region49
    $region48: #{tpu_custom_call.1} parent=1 // pred_region
      _
    $region49: #{tpu_custom_call.1} parent=1 // pred_fallthru
      _
    // Predicated region
    $region50: #{tpu_custom_call.1} parent=1 // pred_check
      _
    $region51: #{tpu_custom_call.1} parent=1 // pred_check_branch
      %116 = sbr.rel (0) target = $region53
    $region52: #{tpu_custom_call.1} parent=1 // pred_region
      %117 = dma.done [#allocation3], 64
    $region53: #{tpu_custom_call.1} parent=1 // pred_fallthru
      _
    // Predicated region
    $region54: #{tpu_custom_call.1} parent=1 // pred_check
      _
    $region55: #{tpu_custom_call.1} parent=1 // pred_check_branch
      %119 = sbr.rel (0) target = $region57
    $region56: #{tpu_custom_call.1} parent=1 // pred_region
      %120 = dma.done [#allocation6], 64
    $region57: #{tpu_custom_call.1} parent=1 // pred_fallthru
      _
    // Predicated region
    $region58: #{tpu_custom_call.1} parent=1 // pred_check
      _
    $region59: #{tpu_custom_call.1} parent=1 // pred_check_branch
      %122 = sbr.rel (0) target = $region61
    $region60: #{tpu_custom_call.1} parent=1 // pred_region
      %123 = dma.done [#allocation6], 1024
    $region61: #{tpu_custom_call.1} parent=1 // pred_fallthru
      _
    // Predicated region
    $region62: #{tpu_custom_call.1} parent=1 // pred_check
      _
    $region63: #{tpu_custom_call.1} parent=1 // pred_check_branch
      %125 = sbr.rel (0) target = $region65
    $region64: #{tpu_custom_call.1} parent=1 // pred_region
      %126 = dma.done [#allocation9], 1024
    $region65: #{tpu_custom_call.1} parent=1 // pred_fallthru
      _
    // Predicated region
    $region66: #{tpu_custom_call.1} parent=1 // pred_check
      _
    $region67: #{tpu_custom_call.1} parent=1 // pred_check_branch
      %128 = sbr.rel (0) target = $region69
    $region68: #{tpu_custom_call.1} parent=1 // pred_region
      %129 = dma.done [#allocation9], 2048
    $region69: #{tpu_custom_call.1} parent=1 // pred_fallthru
      _
    // Predicated region
    $region70: #{tpu_custom_call.1} parent=1 // pred_check
      _
    $region71: #{tpu_custom_call.1} parent=1 // pred_check_branch
      %131 = sbr.rel (0) target = $region73
    $region72: #{tpu_custom_call.1} parent=1 // pred_region
      %132 = dma.done [#allocation12], 1024
    $region73: #{tpu_custom_call.1} parent=1 // pred_fallthru
      _
    // Predicated region
    $region74: #{tpu_custom_call.1} parent=1 // pred_check
      _
    $region75: #{tpu_custom_call.1} parent=1 // pred_check_branch
      %134 = sbr.rel (0) target = $region77
    $region76: #{tpu_custom_call.1} parent=1 // pred_region
      %135 = dma.done [#allocation12], 1024
    $region77: #{tpu_custom_call.1} parent=1 // pred_fallthru
      _
    %v137 = vld [vmem:[#allocation2] sm:$0xf]
    %v138 = vld [vmem:[#allocation7] sm:$0xf]
    %v139 = vld [vmem:[#allocation7 + $0x4] sm:$0xf]
    %v140 = vld [vmem:[#allocation7 + $0x8] sm:$0xf]
    %v141 = vld [vmem:[#allocation7 + $0xc] sm:$0xf]
    %v142 = vld [vmem:[#allocation7 + $0x10] sm:$0xf]
    %v143 = vld [vmem:[#allocation7 + $0x14] sm:$0xf]
    %v144 = vld [vmem:[#allocation7 + $0x18] sm:$0xf]
    %v145 = vld [vmem:[#allocation7 + $0x1c] sm:$0xf]
    %v146 = vld [vmem:[#allocation7 + $0x20] sm:$0xf]
    %v147 = vld [vmem:[#allocation7 + $0x24] sm:$0xf]
    %v148 = vld [vmem:[#allocation7 + $0x28] sm:$0xf]
    %v149 = vld [vmem:[#allocation7 + $0x2c] sm:$0xf]
    %v150 = vld [vmem:[#allocation7 + $0x30] sm:$0xf]
    %v151 = vld [vmem:[#allocation7 + $0x34] sm:$0xf]
    %v152 = vld [vmem:[#allocation7 + $0x38] sm:$0xf]
    %v153 = vld [vmem:[#allocation7 + $0x3c] sm:$0xf]
    %v154 = vld [vmem:[%s3] sm:$0x1]
    %v156 = vlaneseq
    %v157 = vshrl.u32 %v156, 7
    %v158 = vsub.s32 0, %v157
    %v159 = vrot.slane %v154, %v158
    %v177 = vunpack.c.l.b16 %v138
    %v178 = vunpack.c.l.b16 %v139
    %v179 = vunpack.c.l.b16 %v140
    %v180 = vunpack.c.l.b16 %v141
    %v181 = vunpack.c.l.b16 %v142
    %v182 = vunpack.c.l.b16 %v143
    %v183 = vunpack.c.l.b16 %v144
    %v184 = vunpack.c.l.b16 %v145
    %v185 = vunpack.c.l.b16 %v146
    %v186 = vunpack.c.l.b16 %v147
    %v187 = vunpack.c.l.b16 %v148
    %v188 = vunpack.c.l.b16 %v149
    %v189 = vunpack.c.l.b16 %v150
    %v190 = vunpack.c.l.b16 %v151
    %v191 = vunpack.c.l.b16 %v152
    %v192 = vunpack.c.l.b16 %v153
    %v193 = vpack.c.b16 %v178, %v177
    %v194 = vpack.c.b16 %v180, %v179
    %v195 = vpack.c.b16 %v182, %v181
    %v196 = vpack.c.b16 %v184, %v183
    %v197 = vpack.c.b16 %v186, %v185
    %v198 = vpack.c.b16 %v188, %v187
    %v199 = vpack.c.b16 %v190, %v189
    %v200 = vpack.c.b16 %v192, %v191
    %209 = vmatprep.subr.bf16.mxu0 0
    %210 = vmatpush1.bf16.msra.mxu0 %v193
    %211 = vmatprep.subr.bf16.mxu0 0
    %212 = vmatpush1.bf16.msra.mxu0 %v194
    %213 = vmatprep.subr.bf16.mxu0 0
    %214 = vmatpush1.bf16.msra.mxu0 %v195
    %215 = vmatprep.subr.bf16.mxu0 0
    %216 = vmatpush1.bf16.msra.mxu0 %v196
    %217 = vmatprep.subr.bf16.mxu0 0
    %218 = vmatpush1.bf16.msra.mxu0 %v197
    %219 = vmatprep.subr.bf16.mxu0 0
    %220 = vmatpush1.bf16.msra.mxu0 %v198
    %221 = vmatprep.subr.bf16.mxu0 0
    %222 = vmatpush1.bf16.msra.mxu0 %v199
    %223 = vmatprep.subr.bf16.mxu0 0
    %224 = vmatpush1.bf16.msra.mxu0 %v200
    %225 = vmatprep.subr.bf16.mxu0 0
    %226 = vmatpush1.bf16.msra.mxu0 0
    %227 = vmatprep.subr.bf16.mxu0 0
    %228 = vmatpush1.bf16.msra.mxu0 0
    %229 = vmatprep.subr.bf16.mxu0 0
    %230 = vmatpush1.bf16.msra.mxu0 0
    %231 = vmatprep.subr.bf16.mxu0 0
    %232 = vmatpush1.bf16.msra.mxu0 0
    %233 = vmatprep.subr.bf16.mxu0 0
    %234 = vmatpush1.bf16.msra.mxu0 0
    %235 = vmatprep.subr.bf16.mxu0 0
    %236 = vmatpush1.bf16.msra.mxu0 0
    %237 = vmatprep.subr.bf16.mxu0 0
    %238 = vmatpush1.bf16.msra.mxu0 0
    %239 = vmatprep.subr.bf16.mxu0 0
    %240 = vmatpush1.bf16.msra.mxu0 0
    %241 = vmatprep.mubr.bf16.mxu0 0
    %242 = vmatmul.mubr.bf16.gmra.mrb[0].mxu0 %v137
    %v243 = vpop.f32.mrb[0].mxu0
    %v244 = vadd.f32 %v159, %v243
    %v245 = vpop.f32.mrb[0].mxu0
    %v246 = vpop.f32.mrb[0].mxu0
    %v247 = vpop.f32.mrb[0].mxu0
    %248 = vdwg.mxu0
    %v249 = vmax.f32 %v244, 0.0
    %v250 = vpack.c.bf16 %v249, %v249
    %v251 = vld [vmem:[#allocation8] sm:$0xf]
    %v252 = vld [vmem:[#allocation8 + $0x4] sm:$0xf]
    %v253 = vld [vmem:[#allocation8 + $0x8] sm:$0xf]
    %v254 = vld [vmem:[#allocation8 + $0xc] sm:$0xf]
    %v255 = vld [vmem:[#allocation8 + $0x10] sm:$0xf]
    %v256 = vld [vmem:[#allocation8 + $0x14] sm:$0xf]
    %v257 = vld [vmem:[#allocation8 + $0x18] sm:$0xf]
    %v258 = vld [vmem:[#allocation8 + $0x1c] sm:$0xf]
    %v259 = vld [vmem:[#allocation8 + $0x20] sm:$0xf]
    %v260 = vld [vmem:[#allocation8 + $0x24] sm:$0xf]
    %v261 = vld [vmem:[#allocation8 + $0x28] sm:$0xf]
    %v262 = vld [vmem:[#allocation8 + $0x2c] sm:$0xf]
    %v263 = vld [vmem:[#allocation8 + $0x30] sm:$0xf]
    %v264 = vld [vmem:[#allocation8 + $0x34] sm:$0xf]
    %v265 = vld [vmem:[#allocation8 + $0x38] sm:$0xf]
    %v266 = vld [vmem:[#allocation8 + $0x3c] sm:$0xf]
    %v267 = vld [vmem:[%s5] sm:$0x1]
    %v269 = vlaneseq
    %v270 = vshrl.u32 %v269, 7
    %v271 = vsub.s32 0, %v270
    %v272 = vrot.slane %v267, %v271
    %v290 = vunpack.c.l.b16 %v251
    %v291 = vunpack.c.l.b16 %v252
    %v292 = vunpack.c.l.b16 %v253
    %v293 = vunpack.c.l.b16 %v254
    %v294 = vunpack.c.l.b16 %v255
    %v295 = vunpack.c.l.b16 %v256
    %v296 = vunpack.c.l.b16 %v257
    %v297 = vunpack.c.l.b16 %v258
    %v298 = vunpack.c.l.b16 %v259
    %v299 = vunpack.c.l.b16 %v260
    %v300 = vunpack.c.l.b16 %v261
    %v301 = vunpack.c.l.b16 %v262
    %v302 = vunpack.c.l.b16 %v263
    %v303 = vunpack.c.l.b16 %v264
    %v304 = vunpack.c.l.b16 %v265
    %v305 = vunpack.c.l.b16 %v266
    %v306 = vpack.c.b16 %v291, %v290
    %v307 = vpack.c.b16 %v293, %v292
    %v308 = vpack.c.b16 %v295, %v294
    %v309 = vpack.c.b16 %v297, %v296
    %v310 = vpack.c.b16 %v299, %v298
    %v311 = vpack.c.b16 %v301, %v300
    %v312 = vpack.c.b16 %v303, %v302
    %v313 = vpack.c.b16 %v305, %v304
    %322 = vmatprep.subr.bf16.mxu0 0
    %323 = vmatpush1.bf16.msra.mxu0 %v306
    %324 = vmatprep.subr.bf16.mxu0 0
    %325 = vmatpush1.bf16.msra.mxu0 %v307
    %326 = vmatprep.subr.bf16.mxu0 0
    %327 = vmatpush1.bf16.msra.mxu0 %v308
    %328 = vmatprep.subr.bf16.mxu0 0
    %329 = vmatpush1.bf16.msra.mxu0 %v309
    %330 = vmatprep.subr.bf16.mxu0 0
    %331 = vmatpush1.bf16.msra.mxu0 %v310
    %332 = vmatprep.subr.bf16.mxu0 0
    %333 = vmatpush1.bf16.msra.mxu0 %v311
    %334 = vmatprep.subr.bf16.mxu0 0
    %335 = vmatpush1.bf16.msra.mxu0 %v312
    %336 = vmatprep.subr.bf16.mxu0 0
    %337 = vmatpush1.bf16.msra.mxu0 %v313
    %338 = vmatprep.subr.bf16.mxu0 0
    %339 = vmatpush1.bf16.msra.mxu0 0
    %340 = vmatprep.subr.bf16.mxu0 0
    %341 = vmatpush1.bf16.msra.mxu0 0
    %342 = vmatprep.subr.bf16.mxu0 0
    %343 = vmatpush1.bf16.msra.mxu0 0
    %344 = vmatprep.subr.bf16.mxu0 0
    %345 = vmatpush1.bf16.msra.mxu0 0
    %346 = vmatprep.subr.bf16.mxu0 0
    %347 = vmatpush1.bf16.msra.mxu0 0
    %348 = vmatprep.subr.bf16.mxu0 0
    %349 = vmatpush1.bf16.msra.mxu0 0
    %350 = vmatprep.subr.bf16.mxu0 0
    %351 = vmatpush1.bf16.msra.mxu0 0
    %352 = vmatprep.subr.bf16.mxu0 0
    %353 = vmatpush1.bf16.msra.mxu0 0
    %354 = vmatprep.mubr.bf16.mxu0 0
    %355 = vmatmul.mubr.bf16.gmra.mrb[0].mxu0 %v250
    %v356 = vpop.f32.mrb[0].mxu0
    %v357 = vadd.f32 %v272, %v356
    %v358 = vpop.f32.mrb[0].mxu0
    %v359 = vpop.f32.mrb[0].mxu0
    %v360 = vpop.f32.mrb[0].mxu0
    %361 = vdwg.mxu0
    %v362 = vmax.f32 %v357, 0.0
    %v363 = vpack.c.bf16 %v362, %v362
    %v364 = vld [vmem:[#allocation10] sm:$0xff]
    %v365 = vld [vmem:[#allocation10 + $0x8] sm:$0xff]
    %v366 = vld [vmem:[#allocation10 + $0x10] sm:$0xff]
    %v367 = vld [vmem:[#allocation10 + $0x18] sm:$0xff]
    %v368 = vld [vmem:[#allocation10 + $0x20] sm:$0xff]
    %v369 = vld [vmem:[#allocation10 + $0x28] sm:$0xff]
    %v370 = vld [vmem:[#allocation10 + $0x30] sm:$0xff]
    %v371 = vld [vmem:[#allocation10 + $0x38] sm:$0xff]
    %v372 = vld [vmem:[#allocation10 + $0x40] sm:$0xff]
    %v373 = vld [vmem:[#allocation10 + $0x48] sm:$0xff]
    %v374 = vld [vmem:[#allocation10 + $0x50] sm:$0xff]
    %v375 = vld [vmem:[#allocation10 + $0x58] sm:$0xff]
    %v376 = vld [vmem:[#allocation10 + $0x60] sm:$0xff]
    %v377 = vld [vmem:[#allocation10 + $0x68] sm:$0xff]
    %v378 = vld [vmem:[#allocation10 + $0x70] sm:$0xff]
    %v379 = vld [vmem:[#allocation10 + $0x78] sm:$0xff]
    %v380 = vld [vmem:[%s7] sm:$0x3]
    %v382 = vlaneseq
    %v383 = vshrl.u32 %v382, 7
    %v384 = vsub.s32 0, %v383
    %v385 = vrot.slane %v380, %v384
    %v386 = vlaneseq
    %v387 = vshrl.u32 %v386, 7
    %v388 = vsub.s32 1, %v387
    %v389 = vrot.slane %v380, %v388
    %v408 = vunpack.c.l.b16 %v364
    %v409 = vunpack.c.h.b16 %v364
    %v410 = vunpack.c.l.b16 %v365
    %v411 = vunpack.c.h.b16 %v365
    %v412 = vunpack.c.l.b16 %v366
    %v413 = vunpack.c.h.b16 %v366
    %v414 = vunpack.c.l.b16 %v367
    %v415 = vunpack.c.h.b16 %v367
    %v416 = vunpack.c.l.b16 %v368
    %v417 = vunpack.c.h.b16 %v368
    %v418 = vunpack.c.l.b16 %v369
    %v419 = vunpack.c.h.b16 %v369
    %v420 = vunpack.c.l.b16 %v370
    %v421 = vunpack.c.h.b16 %v370
    %v422 = vunpack.c.l.b16 %v371
    %v423 = vunpack.c.h.b16 %v371
    %v424 = vunpack.c.l.b16 %v372
    %v425 = vunpack.c.h.b16 %v372
    %v426 = vunpack.c.l.b16 %v373
    %v427 = vunpack.c.h.b16 %v373
    %v428 = vunpack.c.l.b16 %v374
    %v429 = vunpack.c.h.b16 %v374
    %v430 = vunpack.c.l.b16 %v375
    %v431 = vunpack.c.h.b16 %v375
    %v432 = vunpack.c.l.b16 %v376
    %v433 = vunpack.c.h.b16 %v376
    %v434 = vunpack.c.l.b16 %v377
    %v435 = vunpack.c.h.b16 %v377
    %v436 = vunpack.c.l.b16 %v378
    %v437 = vunpack.c.h.b16 %v378
    %v438 = vunpack.c.l.b16 %v379
    %v439 = vunpack.c.h.b16 %v379
    %v440 = vpack.c.b16 %v410, %v408
    %v441 = vpack.c.b16 %v411, %v409
    %v442 = vpack.c.b16 %v414, %v412
    %v443 = vpack.c.b16 %v415, %v413
    %v444 = vpack.c.b16 %v418, %v416
    %v445 = vpack.c.b16 %v419, %v417
    %v446 = vpack.c.b16 %v422, %v420
    %v447 = vpack.c.b16 %v423, %v421
    %v448 = vpack.c.b16 %v426, %v424
    %v449 = vpack.c.b16 %v427, %v425
    %v450 = vpack.c.b16 %v430, %v428
    %v451 = vpack.c.b16 %v431, %v429
    %v452 = vpack.c.b16 %v434, %v432
    %v453 = vpack.c.b16 %v435, %v433
    %v454 = vpack.c.b16 %v438, %v436
    %v455 = vpack.c.b16 %v439, %v437
    %472 = vmatprep.subr.bf16.mxu0 %v441
    %473 = vmatpush1.bf16.msra.mxu0 %v440
    %474 = vmatprep.subr.bf16.mxu0 %v443
    %475 = vmatpush1.bf16.msra.mxu0 %v442
    %476 = vmatprep.subr.bf16.mxu0 %v445
    %477 = vmatpush1.bf16.msra.mxu0 %v444
    %478 = vmatprep.subr.bf16.mxu0 %v447
    %479 = vmatpush1.bf16.msra.mxu0 %v446
    %480 = vmatprep.subr.bf16.mxu0 %v449
    %481 = vmatpush1.bf16.msra.mxu0 %v448
    %482 = vmatprep.subr.bf16.mxu0 %v451
    %483 = vmatpush1.bf16.msra.mxu0 %v450
    %484 = vmatprep.subr.bf16.mxu0 %v453
    %485 = vmatpush1.bf16.msra.mxu0 %v452
    %486 = vmatprep.subr.bf16.mxu0 %v455
    %487 = vmatpush1.bf16.msra.mxu0 %v454
    %488 = vmatprep.subr.bf16.mxu0 0
    %489 = vmatpush1.bf16.msra.mxu0 0
    %490 = vmatprep.subr.bf16.mxu0 0
    %491 = vmatpush1.bf16.msra.mxu0 0
    %492 = vmatprep.subr.bf16.mxu0 0
    %493 = vmatpush1.bf16.msra.mxu0 0
    %494 = vmatprep.subr.bf16.mxu0 0
    %495 = vmatpush1.bf16.msra.mxu0 0
    %496 = vmatprep.subr.bf16.mxu0 0
    %497 = vmatpush1.bf16.msra.mxu0 0
    %498 = vmatprep.subr.bf16.mxu0 0
    %499 = vmatpush1.bf16.msra.mxu0 0
    %500 = vmatprep.subr.bf16.mxu0 0
    %501 = vmatpush1.bf16.msra.mxu0 0
    %502 = vmatprep.subr.bf16.mxu0 0
    %503 = vmatpush1.bf16.msra.mxu0 0
    %504 = vmatprep.mubr.bf16.mxu0 0
    %505 = vmatmul.mubr.bf16.gmra.mrb[0].mxu0 %v363
    %v506 = vpop.f32.mrb[0].mxu0
    %v507 = vadd.f32 %v385, %v506
    %v508 = vpop.f32.mrb[0].mxu0
    %v509 = vadd.f32 %v389, %v508
    %v510 = vpop.f32.mrb[0].mxu0
    %v511 = vpop.f32.mrb[0].mxu0
    %512 = vdwg.mxu0
    %v513 = vld [vmem:[#allocation5] sm:$0xf]
    %v514 = vunpack.c.l.bf16 %v513
    %v515 = vmul.f32 %v509, 0.5
    %v516 = vmul.f32 %v515, 1.442695
    %v517 = vpow.pop %v516
    %v518 = vmul.f32 %v514, %v517
    %v519 = vadd.f32 %v507, %v518
    %v520 = vpack.c.bf16 %v519, %v519
    %v521 = vld [vmem:[#allocation11] sm:$0xf]
    %v522 = vld [vmem:[#allocation11 + $0x4] sm:$0xf]
    %v523 = vld [vmem:[#allocation11 + $0x8] sm:$0xf]
    %v524 = vld [vmem:[#allocation11 + $0xc] sm:$0xf]
    %v525 = vld [vmem:[#allocation11 + $0x10] sm:$0xf]
    %v526 = vld [vmem:[#allocation11 + $0x14] sm:$0xf]
    %v527 = vld [vmem:[#allocation11 + $0x18] sm:$0xf]
    %v528 = vld [vmem:[#allocation11 + $0x1c] sm:$0xf]
    %v529 = vld [vmem:[#allocation11 + $0x20] sm:$0xf]
    %v530 = vld [vmem:[#allocation11 + $0x24] sm:$0xf]
    %v531 = vld [vmem:[#allocation11 + $0x28] sm:$0xf]
    %v532 = vld [vmem:[#allocation11 + $0x2c] sm:$0xf]
    %v533 = vld [vmem:[#allocation11 + $0x30] sm:$0xf]
    %v534 = vld [vmem:[#allocation11 + $0x34] sm:$0xf]
    %v535 = vld [vmem:[#allocation11 + $0x38] sm:$0xf]
    %v536 = vld [vmem:[#allocation11 + $0x3c] sm:$0xf]
    %v537 = vld [vmem:[%s9] sm:$0x1]
    %v539 = vlaneseq
    %v540 = vshrl.u32 %v539, 7
    %v541 = vsub.s32 0, %v540
    %v542 = vrot.slane %v537, %v541
    %v560 = vunpack.c.l.b16 %v521
    %v561 = vunpack.c.l.b16 %v522
    %v562 = vunpack.c.l.b16 %v523
    %v563 = vunpack.c.l.b16 %v524
    %v564 = vunpack.c.l.b16 %v525
    %v565 = vunpack.c.l.b16 %v526
    %v566 = vunpack.c.l.b16 %v527
    %v567 = vunpack.c.l.b16 %v528
    %v568 = vunpack.c.l.b16 %v529
    %v569 = vunpack.c.l.b16 %v530
    %v570 = vunpack.c.l.b16 %v531
    %v571 = vunpack.c.l.b16 %v532
    %v572 = vunpack.c.l.b16 %v533
    %v573 = vunpack.c.l.b16 %v534
    %v574 = vunpack.c.l.b16 %v535
    %v575 = vunpack.c.l.b16 %v536
    %v576 = vpack.c.b16 %v561, %v560
    %v577 = vpack.c.b16 %v563, %v562
    %v578 = vpack.c.b16 %v565, %v564
    %v579 = vpack.c.b16 %v567, %v566
    %v580 = vpack.c.b16 %v569, %v568
    %v581 = vpack.c.b16 %v571, %v570
    %v582 = vpack.c.b16 %v573, %v572
    %v583 = vpack.c.b16 %v575, %v574
    %592 = vmatprep.subr.bf16.mxu0 0
    %593 = vmatpush1.bf16.msra.mxu0 %v576
    %594 = vmatprep.subr.bf16.mxu0 0
    %595 = vmatpush1.bf16.msra.mxu0 %v577
    %596 = vmatprep.subr.bf16.mxu0 0
    %597 = vmatpush1.bf16.msra.mxu0 %v578
    %598 = vmatprep.subr.bf16.mxu0 0
    %599 = vmatpush1.bf16.msra.mxu0 %v579
    %600 = vmatprep.subr.bf16.mxu0 0
    %601 = vmatpush1.bf16.msra.mxu0 %v580
    %602 = vmatprep.subr.bf16.mxu0 0
    %603 = vmatpush1.bf16.msra.mxu0 %v581
    %604 = vmatprep.subr.bf16.mxu0 0
    %605 = vmatpush1.bf16.msra.mxu0 %v582
    %606 = vmatprep.subr.bf16.mxu0 0
    %607 = vmatpush1.bf16.msra.mxu0 %v583
    %608 = vmatprep.subr.bf16.mxu0 0
    %609 = vmatpush1.bf16.msra.mxu0 0
    %610 = vmatprep.subr.bf16.mxu0 0
    %611 = vmatpush1.bf16.msra.mxu0 0
    %612 = vmatprep.subr.bf16.mxu0 0
    %613 = vmatpush1.bf16.msra.mxu0 0
    %614 = vmatprep.subr.bf16.mxu0 0
    %615 = vmatpush1.bf16.msra.mxu0 0
    %616 = vmatprep.subr.bf16.mxu0 0
    %617 = vmatpush1.bf16.msra.mxu0 0
    %618 = vmatprep.subr.bf16.mxu0 0
    %619 = vmatpush1.bf16.msra.mxu0 0
    %620 = vmatprep.subr.bf16.mxu0 0
    %621 = vmatpush1.bf16.msra.mxu0 0
    %622 = vmatprep.subr.bf16.mxu0 0
    %623 = vmatpush1.bf16.msra.mxu0 0
    %624 = vmatprep.mubr.bf16.mxu0 0
    %625 = vmatmul.mubr.bf16.gmra.mrb[0].mxu0 %v520
    %v626 = vpop.f32.mrb[0].mxu0
    %v627 = vadd.f32 %v542, %v626
    %v628 = vpop.f32.mrb[0].mxu0
    %v629 = vpop.f32.mrb[0].mxu0
    %v630 = vpop.f32.mrb[0].mxu0
    %631 = vdwg.mxu0
    %v632 = vmax.f32 %v627, 0.0
    %v633 = vpack.c.bf16 %v632, %v632
    %v634 = vld [vmem:[#allocation13] sm:$0xf]
    %v635 = vld [vmem:[#allocation13 + $0x4] sm:$0xf]
    %v636 = vld [vmem:[#allocation13 + $0x8] sm:$0xf]
    %v637 = vld [vmem:[#allocation13 + $0xc] sm:$0xf]
    %v638 = vld [vmem:[#allocation13 + $0x10] sm:$0xf]
    %v639 = vld [vmem:[#allocation13 + $0x14] sm:$0xf]
    %v640 = vld [vmem:[#allocation13 + $0x18] sm:$0xf]
    %v641 = vld [vmem:[#allocation13 + $0x1c] sm:$0xf]
    %v642 = vld [vmem:[#allocation13 + $0x20] sm:$0xf]
    %v643 = vld [vmem:[#allocation13 + $0x24] sm:$0xf]
    %v644 = vld [vmem:[#allocation13 + $0x28] sm:$0xf]
    %v645 = vld [vmem:[#allocation13 + $0x2c] sm:$0xf]
    %v646 = vld [vmem:[#allocation13 + $0x30] sm:$0xf]
    %v647 = vld [vmem:[#allocation13 + $0x34] sm:$0xf]
    %v648 = vld [vmem:[#allocation13 + $0x38] sm:$0xf]
    %v649 = vld [vmem:[#allocation13 + $0x3c] sm:$0xf]
    %v650 = vld [vmem:[%s11] sm:$0x1]
    %v652 = vlaneseq
    %v653 = vshrl.u32 %v652, 7
    %v654 = vsub.s32 0, %v653
    %v655 = vrot.slane %v650, %v654
    %v673 = vunpack.c.l.b16 %v634
    %v674 = vunpack.c.l.b16 %v635
    %v675 = vunpack.c.l.b16 %v636
    %v676 = vunpack.c.l.b16 %v637
    %v677 = vunpack.c.l.b16 %v638
    %v678 = vunpack.c.l.b16 %v639
    %v679 = vunpack.c.l.b16 %v640
    %v680 = vunpack.c.l.b16 %v641
    %v681 = vunpack.c.l.b16 %v642
    %v682 = vunpack.c.l.b16 %v643
    %v683 = vunpack.c.l.b16 %v644
    %v684 = vunpack.c.l.b16 %v645
    %v685 = vunpack.c.l.b16 %v646
    %v686 = vunpack.c.l.b16 %v647
    %v687 = vunpack.c.l.b16 %v648
    %v688 = vunpack.c.l.b16 %v649
    %v689 = vpack.c.b16 %v674, %v673
    %v690 = vpack.c.b16 %v676, %v675
    %v691 = vpack.c.b16 %v678, %v677
    %v692 = vpack.c.b16 %v680, %v679
    %v693 = vpack.c.b16 %v682, %v681
    %v694 = vpack.c.b16 %v684, %v683
    %v695 = vpack.c.b16 %v686, %v685
    %v696 = vpack.c.b16 %v688, %v687
    %705 = vmatprep.subr.bf16.mxu0 0
    %706 = vmatpush1.bf16.msra.mxu0 %v689
    %707 = vmatprep.subr.bf16.mxu0 0
    %708 = vmatpush1.bf16.msra.mxu0 %v690
    %709 = vmatprep.subr.bf16.mxu0 0
    %710 = vmatpush1.bf16.msra.mxu0 %v691
    %711 = vmatprep.subr.bf16.mxu0 0
    %712 = vmatpush1.bf16.msra.mxu0 %v692
    %713 = vmatprep.subr.bf16.mxu0 0
    %714 = vmatpush1.bf16.msra.mxu0 %v693
    %715 = vmatprep.subr.bf16.mxu0 0
    %716 = vmatpush1.bf16.msra.mxu0 %v694
    %717 = vmatprep.subr.bf16.mxu0 0
    %718 = vmatpush1.bf16.msra.mxu0 %v695
    %719 = vmatprep.subr.bf16.mxu0 0
    %720 = vmatpush1.bf16.msra.mxu0 %v696
    %721 = vmatprep.subr.bf16.mxu0 0
    %722 = vmatpush1.bf16.msra.mxu0 0
    %723 = vmatprep.subr.bf16.mxu0 0
    %724 = vmatpush1.bf16.msra.mxu0 0
    %725 = vmatprep.subr.bf16.mxu0 0
    %726 = vmatpush1.bf16.msra.mxu0 0
    %727 = vmatprep.subr.bf16.mxu0 0
    %728 = vmatpush1.bf16.msra.mxu0 0
    %729 = vmatprep.subr.bf16.mxu0 0
    %730 = vmatpush1.bf16.msra.mxu0 0
    %731 = vmatprep.subr.bf16.mxu0 0
    %732 = vmatpush1.bf16.msra.mxu0 0
    %733 = vmatprep.subr.bf16.mxu0 0
    %734 = vmatpush1.bf16.msra.mxu0 0
    %735 = vmatprep.subr.bf16.mxu0 0
    %736 = vmatpush1.bf16.msra.mxu0 0
    %737 = vmatprep.mubr.bf16.mxu0 0
    %738 = vmatmul.mubr.bf16.gmra.mrb[0].mxu0 %v633
    %v739 = vpop.f32.mrb[0].mxu0
    %v740 = vadd.f32 %v655, %v739
    %v741 = vpop.f32.mrb[0].mxu0
    %v742 = vpop.f32.mrb[0].mxu0
    %v743 = vpop.f32.mrb[0].mxu0
    %744 = vdwg.mxu0
    %v745 = vmax.f32 %v740, 0.0
    %746 = vst [vmem:[#allocation14] sm:$0xf] %v363
    %v747 = vpack.c.bf16 %v745, %v745
    %748 = vst [vmem:[#allocation14 + $0x4] sm:$0xf] %v747
    %s749 = smul.u32 0, 8
    %v750 = vlaneseq
    %v751 = vshrl.u32 %v750, 7
    %v752 = vstv %s749
    %v753 = vadd.s32 %v752, %v751
    %vm754 = vcmp.lt.s32.totalorder %v753, 8
    %v755 = vunpack.c.l.bf16 %v137
    %v756 = vsub.f32 %v755, %v745
    %v757 = vmul.f32 %v756, %v756
    %v758 = vsel %vm754, 1, 0
    %vm759 = vcmp.eq.s32.totalorder %v758, 1
    %v760 = vsel %vm759, %v757, 0.0
    %761 = vadd.xlane.f32.xlu0 %v760
    %v762 = vpop.xlane.xlu0 %761
    %v763 = vrot.slane %v762, 4
    %v764 = vadd.f32 %v762, %v763
    %v765 = vrot.slane %v764, 2
    %v766 = vadd.f32 %v764, %v765
    %v767 = vrot.slane %v766, 1
    %v768 = vadd.f32 %v766, %v767
    %s769 = vtos %v768
    %v770 = vadd.f32 %v509, 1.0
    %v771 = vmul.f32 %v507, %v507
    %v772 = vsub.f32 %v770, %v771
    %v773 = vmul.f32 %v509, 1.442695
    %v774 = vpow.pop %v773
    %v775 = vsub.f32 %v772, %v774
    %v776 = vsel %vm759, %v775, 0.0
    %777 = vadd.xlane.f32.xlu0 %v776
    %v778 = vpop.xlane.xlu0 %777
    %v779 = vrot.slane %v778, 4
    %v780 = vadd.f32 %v778, %v779
    %v781 = vrot.slane %v780, 2
    %v782 = vadd.f32 %v780, %v781
    %v783 = vrot.slane %v782, 1
    %v784 = vadd.f32 %v782, %v783
    %s785 = vtos %v784
    %v786 = vlaneseq
    %v787 = vand.u32 %v786, 127
    %vm788 = vcmp.eq.s32.totalorder %v787, 0
    %vm789 = vcmp.eq.s32.totalorder %v787, 1
    %v790 = vstv %s785
    %v791 = vsel %vm789, %v790, 0.0
    %v792 = vstv %s769
    %v793 = vsel %vm788, %v792, %v791
    %794 = vst [vmem:[#allocation15] sm:$0xff] %v793
    // Predicated region
    $region78: #{tpu_custom_call.1} parent=1 // pred_check
      _
    $region79: #{tpu_custom_call.1} parent=1 // pred_check_branch
      %796 = sbr.rel (0) target = $region81
    $region80: #{tpu_custom_call.1} parent=1 // pred_region
      %s798 = ssub.s32 128, 128
      %799 = vsyncadd [#allocation4], %s798
      %s801 = sshll.u32 [#allocation14], 4
      %s802 = int_to_ptr.vmem [resolvable:$true] %s801
      %804 = dma.vmem_to_hbm [thread:$0]  %s802, 128, %s12, [#allocation4]
    $region81: #{tpu_custom_call.1} parent=1 // pred_fallthru
      _
    // Predicated region
    $region82: #{tpu_custom_call.1} parent=1 // pred_check
      _
    $region83: #{tpu_custom_call.1} parent=1 // pred_check_branch
      %806 = sbr.rel (0) target = $region85
    $region84: #{tpu_custom_call.1} parent=1 // pred_region
      %s808 = ssub.s32 128, 128
      %809 = vsyncadd [#allocation16], %s808
      %s811 = sshll.u32 [#allocation15], 4
      %s812 = int_to_ptr.vmem [resolvable:$true] %s811
      %814 = dma.vmem_to_hbm [thread:$0]  %s812, 128, %s13, [#allocation16]
    $region85: #{tpu_custom_call.1} parent=1 // pred_fallthru
      _
    // Predicated region
    $region86: #{tpu_custom_call.1} parent=1 // pred_check
      _
    $region87: #{tpu_custom_call.1} parent=1 // pred_check_branch
      %816 = sbr.rel (0) target = $region89
    $region88: #{tpu_custom_call.1} parent=1 // pred_region
      %817 = dma.done [#allocation4], 128
    $region89: #{tpu_custom_call.1} parent=1 // pred_fallthru
      _
    // Predicated region
    $region90: #{tpu_custom_call.1} parent=1 // pred_check
      _
    $region91: #{tpu_custom_call.1} parent=1 // pred_check_branch
      %819 = sbr.rel (0) target = $region93
    $region92: #{tpu_custom_call.1} parent=1 // pred_region
      %820 = dma.done [#allocation16], 128
    $region93: #{tpu_custom_call.1} parent=1 // pred_fallthru
      _
    %821 = vsyncpa [#allocation3], 1
    %822 = vsyncpa [#allocation6], 1
    %823 = vsyncpa [#allocation9], 1
    %824 = vsyncpa [#allocation12], 1
    %825 = vsyncpa [#allocation4], 1
    %826 = vsyncpa [#allocation16], 1

// kernel: tpu_custom_call.1
$region0: #{tpu_custom_call.1}
  #allocation0 [shape = 'u32[]', space=smem, size = 0x4, offset = 0x4, fixed_abs, tag = 'smem constant byte address 0x4 - core index']
  #allocation1 [shape = 'u32[144,128]{1,0:T(1,128)}', space=vmem, size = 0x12000, scoped, tag = 'internal scratch']
  %s0 = inlined_call_operand.hbm [shape: bf16[8,128], index: 0, kind: input, shape index: {}]
  %s1 = inlined_call_operand.hbm [shape: bf16[8,128], index: 1, kind: input, shape index: {}]
  %s2 = inlined_call_operand.hbm [shape: bf16[128,128], index: 2, kind: input, shape index: {}]
  %s3 = inlined_call_operand.vmem [shape: f32[1,128], index: 3, kind: input, shape index: {}]
  %s4 = inlined_call_operand.hbm [shape: bf16[128,128], index: 4, kind: input, shape index: {}]
  %s5 = inlined_call_operand.vmem [shape: f32[1,128], index: 5, kind: input, shape index: {}]
  %s6 = inlined_call_operand.hbm [shape: bf16[128,256], index: 6, kind: input, shape index: {}]
  %s7 = inlined_call_operand.vmem [shape: f32[1,256], index: 7, kind: input, shape index: {}]
  %s8 = inlined_call_operand.hbm [shape: bf16[128,128], index: 8, kind: input, shape index: {}]
  %s9 = inlined_call_operand.vmem [shape: f32[1,128], index: 9, kind: input, shape index: {}]
  %s10 = inlined_call_operand.hbm [shape: bf16[128,128], index: 10, kind: input, shape index: {}]
  %s11 = inlined_call_operand.vmem [shape: f32[1,128], index: 11, kind: input, shape index: {}]
  %s12 = inlined_call_operand.hbm [shape: bf16[8,256], index: 12, kind: output, shape index: {0}]
  %s13 = inlined_call_operand.hbm [shape: f32[1,8,128], index: 13, kind: output, shape index: {1}]
  %14 = xla_tuple %s12, %s13
  %s15 = sld [smem:[#allocation0]]
  $region94: #{tpu_custom_call.1} parent=0
    _
  %s17 = ssub.s32 1, %s15
  %s18 = scalar_select 0, %s17, %s15
  $region1: #{tpu_custom_call.1} parent=0
    #allocation2 [shape = 'u8[2048]{0}', space=vmem, size = 0x800, scoped, tag = 'input window, operand 0, single buffered']
    #allocation3 [shape = 's32[1]{0}', space=sflag, size = 0x4, scoped, tag = 'scoped memory for tpu_custom_call.1']
    #allocation4 [shape = 's32[1]{0}', space=sflag, size = 0x4, scoped, tag = 'scoped memory for tpu_custom_call.1']
    #allocation5 [shape = 'u8[2048]{0}', space=vmem, size = 0x800, scoped, tag = 'input window, operand 1, single buffered']
    #allocation6 [shape = 's32[1]{0}', space=sflag, size = 0x4, scoped, tag = 'scoped memory for tpu_custom_call.1']
    #allocation7 [shape = 'u8[32768]{0}', space=vmem, size = 0x8000, scoped, tag = 'input window, operand 2, single buffered']
    #allocation8 [shape = 'u8[32768]{0}', space=vmem, size = 0x8000, scoped, tag = 'input window, operand 4, single buffered']
    #allocation9 [shape = 's32[1]{0}', space=sflag, size = 0x4, scoped, tag = 'scoped memory for tpu_custom_call.1']
    #allocation10 [shape = 'u8[65536]{0}', space=vmem, size = 0x10000, scoped, tag = 'input window, operand 6, single buffered']
    #allocation11 [shape = 'u8[32768]{0}', space=vmem, size = 0x8000, scoped, tag = 'input window, operand 8, single buffered']
    #allocation12 [shape = 's32[1]{0}', space=sflag, size = 0x4, scoped, tag = 'scoped memory for tpu_custom_call.1']
    #allocation13 [shape = 'u8[32768]{0}', space=vmem, size = 0x8000, scoped, tag = 'input window, operand 10, single buffered']
    #allocation14 [shape = 'u8[4096]{0}', space=vmem, size = 0x1000, scoped, tag = 'output window, operand 0, single buffered']
    #allocation15 [shape = 'u8[4096]{0}', space=vmem, size = 0x1000, scoped, tag = 'output window, operand 1, single buffered']
    #allocation16 [shape = 's32[1]{0}', space=sflag, size = 0x4, scoped, tag = 'scoped memory for tpu_custom_call.1']
    %19 = vsyncpa [#allocation3], 0
    %20 = vsyncpa [#allocation6], 0
    %21 = vsyncpa [#allocation9], 0
    %22 = vsyncpa [#allocation12], 0
    %23 = vsyncpa [#allocation4], 0
    %24 = vsyncpa [#allocation16], 0
    // Predicated region
    $region2: #{tpu_custom_call.1} parent=1 // pred_check
      _
    $region3: #{tpu_custom_call.1} parent=1 // pred_check_branch
      %26 = sbr.rel (0) target = $region5
    $region4: #{tpu_custom_call.1} parent=1 // pred_region
      %s28 = ssub.s32 64, 64
      %29 = vsyncadd [#allocation3], %s28
      %s31 = sshll.u32 [#allocation2], 4
      %s32 = int_to_ptr.vmem [resolvable:$true] %s31
      %34 = dma.hbm_to_vmem [thread:$0]  %s0, 64, %s32, [#allocation3]
    $region5: #{tpu_custom_call.1} parent=1 // pred_fallthru
      _
    // Predicated region
    $region6: #{tpu_custom_call.1} parent=1 // pred_check
      _
    $region7: #{tpu_custom_call.1} parent=1 // pred_check_branch
      %36 = sbr.rel (0) target = $region9
    $region8: #{tpu_custom_call.1} parent=1 // pred_region
      %s38 = ssub.s32 64, 64
      %39 = vsyncadd [#allocation6], %s38
      %s41 = sshll.u32 [#allocation5], 4
      %s42 = int_to_ptr.vmem [resolvable:$true] %s41
      %44 = dma.hbm_to_vmem [thread:$0]  %s1, 64, %s42, [#allocation6]
    $region9: #{tpu_custom_call.1} parent=1 // pred_fallthru
      _
    // Predicated region
    $region10: #{tpu_custom_call.1} parent=1 // pred_check
      _
    $region11: #{tpu_custom_call.1} parent=1 // pred_check_branch
      %46 = sbr.rel (0) target = $region13
    $region12: #{tpu_custom_call.1} parent=1 // pred_region
      %s48 = ssub.s32 1024, 1024
      %49 = vsyncadd [#allocation6], %s48
      %s50 = sshll.u32 [#allocation7], 4
      %s51 = int_to_ptr.vmem [resolvable:$true] %s50
      %56 = dma.hbm_to_vmem [thread:$0]  %s2, 1024, %s51, [#allocation6], 64, 64, 4
    $region13: #{tpu_custom_call.1} parent=1 // pred_fallthru
      _
    // Predicated region
    $region14: #{tpu_custom_call.1} parent=1 // pred_check
      _
    $region15: #{tpu_custom_call.1} parent=1 // pred_check_branch
      %58 = sbr.rel (0) target = $region17
    $region16: #{tpu_custom_call.1} parent=1 // pred_region
      _
    $region17: #{tpu_custom_call.1} parent=1 // pred_fallthru
      _
    // Predicated region
    $region18: #{tpu_custom_call.1} parent=1 // pred_check
      _
    $region19: #{tpu_custom_call.1} parent=1 // pred_check_branch
      %60 = sbr.rel (0) target = $region21
    $region20: #{tpu_custom_call.1} parent=1 // pred_region
      %s62 = ssub.s32 1024, 1024
      %63 = vsyncadd [#allocation9], %s62
      %s64 = sshll.u32 [#allocation8], 4
      %s65 = int_to_ptr.vmem [resolvable:$true] %s64
      %70 = dma.hbm_to_vmem [thread:$0]  %s4, 1024, %s65, [#allocation9], 64, 64, 4
    $region21: #{tpu_custom_call.1} parent=1 // pred_fallthru
      _
    // Predicated region
    $region22: #{tpu_custom_call.1} parent=1 // pred_check
      _
    $region23: #{tpu_custom_call.1} parent=1 // pred_check_branch
      %72 = sbr.rel (0) target = $region25
    $region24: #{tpu_custom_call.1} parent=1 // pred_region
      _
    $region25: #{tpu_custom_call.1} parent=1 // pred_fallthru
      _
    // Predicated region
    $region26: #{tpu_custom_call.1} parent=1 // pred_check
      _
    $region27: #{tpu_custom_call.1} parent=1 // pred_check_branch
      %74 = sbr.rel (0) target = $region29
    $region28: #{tpu_custom_call.1} parent=1 // pred_region
      %s76 = ssub.s32 2048, 2048
      %77 = vsyncadd [#allocation9], %s76
      %s78 = sshll.u32 [#allocation10], 4
      %s79 = int_to_ptr.vmem [resolvable:$true] %s78
      %84 = dma.hbm_to_vmem [thread:$0]  %s6, 2048, %s79, [#allocation9], 128, 128, 8
    $region29: #{tpu_custom_call.1} parent=1 // pred_fallthru
      _
    // Predicated region
    $region30: #{tpu_custom_call.1} parent=1 // pred_check
      _
    $region31: #{tpu_custom_call.1} parent=1 // pred_check_branch
      %86 = sbr.rel (0) target = $region33
    $region32: #{tpu_custom_call.1} parent=1 // pred_region
      _
    $region33: #{tpu_custom_call.1} parent=1 // pred_fallthru
      _
    // Predicated region
    $region34: #{tpu_custom_call.1} parent=1 // pred_check
      _
    $region35: #{tpu_custom_call.1} parent=1 // pred_check_branch
      %88 = sbr.rel (0) target = $region37
    $region36: #{tpu_custom_call.1} parent=1 // pred_region
      %s90 = ssub.s32 1024, 1024
      %91 = vsyncadd [#allocation12], %s90
      %s92 = sshll.u32 [#allocation11], 4
      %s93 = int_to_ptr.vmem [resolvable:$true] %s92
      %98 = dma.hbm_to_vmem [thread:$0]  %s8, 1024, %s93, [#allocation12], 64, 64, 4
    $region37: #{tpu_custom_call.1} parent=1 // pred_fallthru
      _
    // Predicated region
    $region38: #{tpu_custom_call.1} parent=1 // pred_check
      _
    $region39: #{tpu_custom_call.1} parent=1 // pred_check_branch
      %100 = sbr.rel (0) target = $region41
    $region40: #{tpu_custom_call.1} parent=1 // pred_region
      _
    $region41: #{tpu_custom_call.1} parent=1 // pred_fallthru
      _
    // Predicated region
    $region42: #{tpu_custom_call.1} parent=1 // pred_check
      _
    $region43: #{tpu_custom_call.1} parent=1 // pred_check_branch
      %102 = sbr.rel (0) target = $region45
    $region44: #{tpu_custom_call.1} parent=1 // pred_region
      %s104 = ssub.s32 1024, 1024
      %105 = vsyncadd [#allocation12], %s104
      %s106 = sshll.u32 [#allocation13], 4
      %s107 = int_to_ptr.vmem [resolvable:$true] %s106
      %112 = dma.hbm_to_vmem [thread:$0]  %s10, 1024, %s107, [#allocation12], 64, 64, 4
    $region45: #{tpu_custom_call.1} parent=1 // pred_fallthru
      _
    // Predicated region
    $region46: #{tpu_custom_call.1} parent=1 // pred_check
      _
    $region47: #{tpu_custom_call.1} parent=1 // pred_check_branch
      %114 = sbr.rel (0) target = $region49
    $region48: #{tpu_custom_call.1} parent=1 // pred_region
      _
    $region49: #{tpu_custom_call.1} parent=1 // pred_fallthru
      _
    // Predicated region
    $region50: #{tpu_custom_call.1} parent=1 // pred_check
      _
    $region51: #{tpu_custom_call.1} parent=1 // pred_check_branch
      %116 = sbr.rel (0) target = $region53
    $region52: #{tpu_custom_call.1} parent=1 // pred_region
      %117 = dma.done [#allocation3], 64
    $region53: #{tpu_custom_call.1} parent=1 // pred_fallthru
      _
    // Predicated region
    $region54: #{tpu_custom_call.1} parent=1 // pred_check
      _
    $region55: #{tpu_custom_call.1} parent=1 // pred_check_branch
      %119 = sbr.rel (0) target = $region57
    $region56: #{tpu_custom_call.1} parent=1 // pred_region
      %120 = dma.done [#allocation6], 64
    $region57: #{tpu_custom_call.1} parent=1 // pred_fallthru
      _
    // Predicated region
    $region58: #{tpu_custom_call.1} parent=1 // pred_check
      _
    $region59: #{tpu_custom_call.1} parent=1 // pred_check_branch
      %122 = sbr.rel (0) target = $region61
    $region60: #{tpu_custom_call.1} parent=1 // pred_region
      %123 = dma.done [#allocation6], 1024
    $region61: #{tpu_custom_call.1} parent=1 // pred_fallthru
      _
    // Predicated region
    $region62: #{tpu_custom_call.1} parent=1 // pred_check
      _
    $region63: #{tpu_custom_call.1} parent=1 // pred_check_branch
      %125 = sbr.rel (0) target = $region65
    $region64: #{tpu_custom_call.1} parent=1 // pred_region
      %126 = dma.done [#allocation9], 1024
    $region65: #{tpu_custom_call.1} parent=1 // pred_fallthru
      _
    // Predicated region
    $region66: #{tpu_custom_call.1} parent=1 // pred_check
      _
    $region67: #{tpu_custom_call.1} parent=1 // pred_check_branch
      %128 = sbr.rel (0) target = $region69
    $region68: #{tpu_custom_call.1} parent=1 // pred_region
      %129 = dma.done [#allocation9], 2048
    $region69: #{tpu_custom_call.1} parent=1 // pred_fallthru
      _
    // Predicated region
    $region70: #{tpu_custom_call.1} parent=1 // pred_check
      _
    $region71: #{tpu_custom_call.1} parent=1 // pred_check_branch
      %131 = sbr.rel (0) target = $region73
    $region72: #{tpu_custom_call.1} parent=1 // pred_region
      %132 = dma.done [#allocation12], 1024
    $region73: #{tpu_custom_call.1} parent=1 // pred_fallthru
      _
    // Predicated region
    $region74: #{tpu_custom_call.1} parent=1 // pred_check
      _
    $region75: #{tpu_custom_call.1} parent=1 // pred_check_branch
      %134 = sbr.rel (0) target = $region77
    $region76: #{tpu_custom_call.1} parent=1 // pred_region
      %135 = dma.done [#allocation12], 1024
    $region77: #{tpu_custom_call.1} parent=1 // pred_fallthru
      _
    %v137 = vld [vmem:[#allocation2] sm:$0xf]
    %v138 = vld [vmem:[#allocation7] sm:$0xf]
    %v139 = vld [vmem:[#allocation7 + $0x4] sm:$0xf]
    %v140 = vld [vmem:[#allocation7 + $0x8] sm:$0xf]
    %v141 = vld [vmem:[#allocation7 + $0xc] sm:$0xf]
    %v142 = vld [vmem:[#allocation7 + $0x10] sm:$0xf]
    %v143 = vld [vmem:[#allocation7 + $0x14] sm:$0xf]
    %v144 = vld [vmem:[#allocation7 + $0x18] sm:$0xf]
    %v145 = vld [vmem:[#allocation7 + $0x1c] sm:$0xf]
    %v146 = vld [vmem:[#allocation7 + $0x20] sm:$0xf]
    %v147 = vld [vmem:[#allocation7 + $0x24] sm:$0xf]
    %v148 = vld [vmem:[#allocation7 + $0x28] sm:$0xf]
    %v149 = vld [vmem:[#allocation7 + $0x2c] sm:$0xf]
    %v150 = vld [vmem:[#allocation7 + $0x30] sm:$0xf]
    %v151 = vld [vmem:[#allocation7 + $0x34] sm:$0xf]
    %v152 = vld [vmem:[#allocation7 + $0x38] sm:$0xf]
    %v153 = vld [vmem:[#allocation7 + $0x3c] sm:$0xf]
    %v154 = vld [vmem:[%s3] sm:$0x1]
    %v156 = vlaneseq
    %v157 = vshrl.u32 %v156, 7
    %v158 = vsub.s32 0, %v157
    %v159 = vrot.slane %v154, %v158
    %v177 = vunpack.c.l.b16 %v138
    %v178 = vunpack.c.l.b16 %v139
    %v179 = vunpack.c.l.b16 %v140
    %v180 = vunpack.c.l.b16 %v141
    %v181 = vunpack.c.l.b16 %v142
    %v182 = vunpack.c.l.b16 %v143
    %v183 = vunpack.c.l.b16 %v144
    %v184 = vunpack.c.l.b16 %v145
    %v185 = vunpack.c.l.b16 %v146
    %v186 = vunpack.c.l.b16 %v147
    %v187 = vunpack.c.l.b16 %v148
    %v188 = vunpack.c.l.b16 %v149
    %v189 = vunpack.c.l.b16 %v150
    %v190 = vunpack.c.l.b16 %v151
    %v191 = vunpack.c.l.b16 %v152
    %v192 = vunpack.c.l.b16 %v153
    %v193 = vpack.c.b16 %v178, %v177
    %v194 = vpack.c.b16 %v180, %v179
    %v195 = vpack.c.b16 %v182, %v181
    %v196 = vpack.c.b16 %v184, %v183
    %v197 = vpack.c.b16 %v186, %v185
    %v198 = vpack.c.b16 %v188, %v187
    %v199 = vpack.c.b16 %v190, %v189
    %v200 = vpack.c.b16 %v192, %v191
    %209 = vmatprep.subr.bf16.mxu0 0
    %210 = vmatpush1.bf16.msra.mxu0 %v193
    %211 = vmatprep.subr.bf16.mxu0 0
    %212 = vmatpush1.bf16.msra.mxu0 %v194
    %213 = vmatprep.subr.bf16.mxu0 0
    %214 = vmatpush1.bf16.msra.mxu0 %v195
    %215 = vmatprep.subr.bf16.mxu0 0
    %216 = vmatpush1.bf16.msra.mxu0 %v196
    %217 = vmatprep.subr.bf16.mxu0 0
    %218 = vmatpush1.bf16.msra.mxu0 %v197
    %219 = vmatprep.subr.bf16.mxu0 0
    %220 = vmatpush1.bf16.msra.mxu0 %v198
    %221 = vmatprep.subr.bf16.mxu0 0
    %222 = vmatpush1.bf16.msra.mxu0 %v199
    %223 = vmatprep.subr.bf16.mxu0 0
    %224 = vmatpush1.bf16.msra.mxu0 %v200
    %225 = vmatprep.subr.bf16.mxu0 0
    %226 = vmatpush1.bf16.msra.mxu0 0
    %227 = vmatprep.subr.bf16.mxu0 0
    %228 = vmatpush1.bf16.msra.mxu0 0
    %229 = vmatprep.subr.bf16.mxu0 0
    %230 = vmatpush1.bf16.msra.mxu0 0
    %231 = vmatprep.subr.bf16.mxu0 0
    %232 = vmatpush1.bf16.msra.mxu0 0
    %233 = vmatprep.subr.bf16.mxu0 0
    %234 = vmatpush1.bf16.msra.mxu0 0
    %235 = vmatprep.subr.bf16.mxu0 0
    %236 = vmatpush1.bf16.msra.mxu0 0
    %237 = vmatprep.subr.bf16.mxu0 0
    %238 = vmatpush1.bf16.msra.mxu0 0
    %239 = vmatprep.subr.bf16.mxu0 0
    %240 = vmatpush1.bf16.msra.mxu0 0
    %241 = vmatprep.mubr.bf16.mxu0 0
    %242 = vmatmul.mubr.bf16.gmra.mrb[0].mxu0 %v137
    %v243 = vpop.f32.mrb[0].mxu0
    %v244 = vadd.f32 %v159, %v243
    %v245 = vpop.f32.mrb[0].mxu0
    %v246 = vpop.f32.mrb[0].mxu0
    %v247 = vpop.f32.mrb[0].mxu0
    %248 = vdwg.mxu0
    %v249 = vmax.f32 %v244, 0.0
    %v250 = vpack.c.bf16 %v249, %v249
    %v251 = vld [vmem:[#allocation8] sm:$0xf]
    %v252 = vld [vmem:[#allocation8 + $0x4] sm:$0xf]
    %v253 = vld [vmem:[#allocation8 + $0x8] sm:$0xf]
    %v254 = vld [vmem:[#allocation8 + $0xc] sm:$0xf]
    %v255 = vld [vmem:[#allocation8 + $0x10] sm:$0xf]
    %v256 = vld [vmem:[#allocation8 + $0x14] sm:$0xf]
    %v257 = vld [vmem:[#allocation8 + $0x18] sm:$0xf]
    %v258 = vld [vmem:[#allocation8 + $0x1c] sm:$0xf]
    %v259 = vld [vmem:[#allocation8 + $0x20] sm:$0xf]
    %v260 = vld [vmem:[#allocation8 + $0x24] sm:$0xf]
    %v261 = vld [vmem:[#allocation8 + $0x28] sm:$0xf]
    %v262 = vld [vmem:[#allocation8 + $0x2c] sm:$0xf]
    %v263 = vld [vmem:[#allocation8 + $0x30] sm:$0xf]
    %v264 = vld [vmem:[#allocation8 + $0x34] sm:$0xf]
    %v265 = vld [vmem:[#allocation8 + $0x38] sm:$0xf]
    %v266 = vld [vmem:[#allocation8 + $0x3c] sm:$0xf]
    %v267 = vld [vmem:[%s5] sm:$0x1]
    %v269 = vlaneseq
    %v270 = vshrl.u32 %v269, 7
    %v271 = vsub.s32 0, %v270
    %v272 = vrot.slane %v267, %v271
    %v290 = vunpack.c.l.b16 %v251
    %v291 = vunpack.c.l.b16 %v252
    %v292 = vunpack.c.l.b16 %v253
    %v293 = vunpack.c.l.b16 %v254
    %v294 = vunpack.c.l.b16 %v255
    %v295 = vunpack.c.l.b16 %v256
    %v296 = vunpack.c.l.b16 %v257
    %v297 = vunpack.c.l.b16 %v258
    %v298 = vunpack.c.l.b16 %v259
    %v299 = vunpack.c.l.b16 %v260
    %v300 = vunpack.c.l.b16 %v261
    %v301 = vunpack.c.l.b16 %v262
    %v302 = vunpack.c.l.b16 %v263
    %v303 = vunpack.c.l.b16 %v264
    %v304 = vunpack.c.l.b16 %v265
    %v305 = vunpack.c.l.b16 %v266
    %v306 = vpack.c.b16 %v291, %v290
    %v307 = vpack.c.b16 %v293, %v292
    %v308 = vpack.c.b16 %v295, %v294
    %v309 = vpack.c.b16 %v297, %v296
    %v310 = vpack.c.b16 %v299, %v298
    %v311 = vpack.c.b16 %v301, %v300
    %v312 = vpack.c.b16 %v303, %v302
    %v313 = vpack.c.b16 %v305, %v304
    %322 = vmatprep.subr.bf16.mxu0 0
    %323 = vmatpush1.bf16.msra.mxu0 %v306
    %324 = vmatprep.subr.bf16.mxu0 0
    %325 = vmatpush1.bf16.msra.mxu0 %v307
    %326 = vmatprep.subr.bf16.mxu0 0
    %327 = vmatpush1.bf16.msra.mxu0 %v308
    %328 = vmatprep.subr.bf16.mxu0 0
    %329 = vmatpush1.bf16.msra.mxu0 %v309
    %330 = vmatprep.subr.bf16.mxu0 0
    %331 = vmatpush1.bf16.msra.mxu0 %v310
    %332 = vmatprep.subr.bf16.mxu0 0
    %333 = vmatpush1.bf16.msra.mxu0 %v311
    %334 = vmatprep.subr.bf16.mxu0 0
    %335 = vmatpush1.bf16.msra.mxu0 %v312
    %336 = vmatprep.subr.bf16.mxu0 0
    %337 = vmatpush1.bf16.msra.mxu0 %v313
    %338 = vmatprep.subr.bf16.mxu0 0
    %339 = vmatpush1.bf16.msra.mxu0 0
    %340 = vmatprep.subr.bf16.mxu0 0
    %341 = vmatpush1.bf16.msra.mxu0 0
    %342 = vmatprep.subr.bf16.mxu0 0
    %343 = vmatpush1.bf16.msra.mxu0 0
    %344 = vmatprep.subr.bf16.mxu0 0
    %345 = vmatpush1.bf16.msra.mxu0 0
    %346 = vmatprep.subr.bf16.mxu0 0
    %347 = vmatpush1.bf16.msra.mxu0 0
    %348 = vmatprep.subr.bf16.mxu0 0
    %349 = vmatpush1.bf16.msra.mxu0 0
    %350 = vmatprep.subr.bf16.mxu0 0
    %351 = vmatpush1.bf16.msra.mxu0 0
    %352 = vmatprep.subr.bf16.mxu0 0
    %353 = vmatpush1.bf16.msra.mxu0 0
    %354 = vmatprep.mubr.bf16.mxu0 0
    %355 = vmatmul.mubr.bf16.gmra.mrb[0].mxu0 %v250
    %v356 = vpop.f32.mrb[0].mxu0
    %v357 = vadd.f32 %v272, %v356
    %v358 = vpop.f32.mrb[0].mxu0
    %v359 = vpop.f32.mrb[0].mxu0
    %v360 = vpop.f32.mrb[0].mxu0
    %361 = vdwg.mxu0
    %v362 = vmax.f32 %v357, 0.0
    %v363 = vpack.c.bf16 %v362, %v362
    %v364 = vld [vmem:[#allocation10] sm:$0xff]
    %v365 = vld [vmem:[#allocation10 + $0x8] sm:$0xff]
    %v366 = vld [vmem:[#allocation10 + $0x10] sm:$0xff]
    %v367 = vld [vmem:[#allocation10 + $0x18] sm:$0xff]
    %v368 = vld [vmem:[#allocation10 + $0x20] sm:$0xff]
    %v369 = vld [vmem:[#allocation10 + $0x28] sm:$0xff]
    %v370 = vld [vmem:[#allocation10 + $0x30] sm:$0xff]
    %v371 = vld [vmem:[#allocation10 + $0x38] sm:$0xff]
    %v372 = vld [vmem:[#allocation10 + $0x40] sm:$0xff]
    %v373 = vld [vmem:[#allocation10 + $0x48] sm:$0xff]
    %v374 = vld [vmem:[#allocation10 + $0x50] sm:$0xff]
    %v375 = vld [vmem:[#allocation10 + $0x58] sm:$0xff]
    %v376 = vld [vmem:[#allocation10 + $0x60] sm:$0xff]
    %v377 = vld [vmem:[#allocation10 + $0x68] sm:$0xff]
    %v378 = vld [vmem:[#allocation10 + $0x70] sm:$0xff]
    %v379 = vld [vmem:[#allocation10 + $0x78] sm:$0xff]
    %v380 = vld [vmem:[%s7] sm:$0x3]
    %v382 = vlaneseq
    %v383 = vshrl.u32 %v382, 7
    %v384 = vsub.s32 0, %v383
    %v385 = vrot.slane %v380, %v384
    %v386 = vlaneseq
    %v387 = vshrl.u32 %v386, 7
    %v388 = vsub.s32 1, %v387
    %v389 = vrot.slane %v380, %v388
    %v408 = vunpack.c.l.b16 %v364
    %v409 = vunpack.c.h.b16 %v364
    %v410 = vunpack.c.l.b16 %v365
    %v411 = vunpack.c.h.b16 %v365
    %v412 = vunpack.c.l.b16 %v366
    %v413 = vunpack.c.h.b16 %v366
    %v414 = vunpack.c.l.b16 %v367
    %v415 = vunpack.c.h.b16 %v367
    %v416 = vunpack.c.l.b16 %v368
    %v417 = vunpack.c.h.b16 %v368
    %v418 = vunpack.c.l.b16 %v369
    %v419 = vunpack.c.h.b16 %v369
    %v420 = vunpack.c.l.b16 %v370
    %v421 = vunpack.c.h.b16 %v370
    %v422 = vunpack.c.l.b16 %v371
    %v423 = vunpack.c.h.b16 %v371
    %v424 = vunpack.c.l.b16 %v372
    %v425 = vunpack.c.h.b16 %v372
    %v426 = vunpack.c.l.b16 %v373
    %v427 = vunpack.c.h.b16 %v373
    %v428 = vunpack.c.l.b16 %v374
    %v429 = vunpack.c.h.b16 %v374
    %v430 = vunpack.c.l.b16 %v375
    %v431 = vunpack.c.h.b16 %v375
    %v432 = vunpack.c.l.b16 %v376
    %v433 = vunpack.c.h.b16 %v376
    %v434 = vunpack.c.l.b16 %v377
    %v435 = vunpack.c.h.b16 %v377
    %v436 = vunpack.c.l.b16 %v378
    %v437 = vunpack.c.h.b16 %v378
    %v438 = vunpack.c.l.b16 %v379
    %v439 = vunpack.c.h.b16 %v379
    %v440 = vpack.c.b16 %v410, %v408
    %v441 = vpack.c.b16 %v411, %v409
    %v442 = vpack.c.b16 %v414, %v412
    %v443 = vpack.c.b16 %v415, %v413
    %v444 = vpack.c.b16 %v418, %v416
    %v445 = vpack.c.b16 %v419, %v417
    %v446 = vpack.c.b16 %v422, %v420
    %v447 = vpack.c.b16 %v423, %v421
    %v448 = vpack.c.b16 %v426, %v424
    %v449 = vpack.c.b16 %v427, %v425
    %v450 = vpack.c.b16 %v430, %v428
    %v451 = vpack.c.b16 %v431, %v429
    %v452 = vpack.c.b16 %v434, %v432
    %v453 = vpack.c.b16 %v435, %v433
    %v454 = vpack.c.b16 %v438, %v436
    %v455 = vpack.c.b16 %v439, %v437
    %472 = vmatprep.subr.bf16.mxu0 %v441
    %473 = vmatpush1.bf16.msra.mxu0 %v440
    %474 = vmatprep.subr.bf16.mxu0 %v443
    %475 = vmatpush1.bf16.msra.mxu0 %v442
    %476 = vmatprep.subr.bf16.mxu0 %v445
    %477 = vmatpush1.bf16.msra.mxu0 %v444
    %478 = vmatprep.subr.bf16.mxu0 %v447
    %479 = vmatpush1.bf16.msra.mxu0 %v446
    %480 = vmatprep.subr.bf16.mxu0 %v449
    %481 = vmatpush1.bf16.msra.mxu0 %v448
    %482 = vmatprep.subr.bf16.mxu0 %v451
    %483 = vmatpush1.bf16.msra.mxu0 %v450
    %484 = vmatprep.subr.bf16.mxu0 %v453
    %485 = vmatpush1.bf16.msra.mxu0 %v452
    %486 = vmatprep.subr.bf16.mxu0 %v455
    %487 = vmatpush1.bf16.msra.mxu0 %v454
    %488 = vmatprep.subr.bf16.mxu0 0
    %489 = vmatpush1.bf16.msra.mxu0 0
    %490 = vmatprep.subr.bf16.mxu0 0
    %491 = vmatpush1.bf16.msra.mxu0 0
    %492 = vmatprep.subr.bf16.mxu0 0
    %493 = vmatpush1.bf16.msra.mxu0 0
    %494 = vmatprep.subr.bf16.mxu0 0
    %495 = vmatpush1.bf16.msra.mxu0 0
    %496 = vmatprep.subr.bf16.mxu0 0
    %497 = vmatpush1.bf16.msra.mxu0 0
    %498 = vmatprep.subr.bf16.mxu0 0
    %499 = vmatpush1.bf16.msra.mxu0 0
    %500 = vmatprep.subr.bf16.mxu0 0
    %501 = vmatpush1.bf16.msra.mxu0 0
    %502 = vmatprep.subr.bf16.mxu0 0
    %503 = vmatpush1.bf16.msra.mxu0 0
    %504 = vmatprep.mubr.bf16.mxu0 0
    %505 = vmatmul.mubr.bf16.gmra.mrb[0].mxu0 %v363
    %v506 = vpop.f32.mrb[0].mxu0
    %v507 = vadd.f32 %v385, %v506
    %v508 = vpop.f32.mrb[0].mxu0
    %v509 = vadd.f32 %v389, %v508
    %v510 = vpop.f32.mrb[0].mxu0
    %v511 = vpop.f32.mrb[0].mxu0
    %512 = vdwg.mxu0
    %v513 = vld [vmem:[#allocation5] sm:$0xf]
    %v514 = vunpack.c.l.bf16 %v513
    %v515 = vmul.f32 %v509, 0.5
    %v516 = vmul.f32 %v515, 1.442695
    %v517 = vpow.pop %v516
    %v518 = vmul.f32 %v514, %v517
    %v519 = vadd.f32 %v507, %v518
    %v520 = vpack.c.bf16 %v519, %v519
    %v521 = vld [vmem:[#allocation11] sm:$0xf]
    %v522 = vld [vmem:[#allocation11 + $0x4] sm:$0xf]
    %v523 = vld [vmem:[#allocation11 + $0x8] sm:$0xf]
    %v524 = vld [vmem:[#allocation11 + $0xc] sm:$0xf]
    %v525 = vld [vmem:[#allocation11 + $0x10] sm:$0xf]
    %v526 = vld [vmem:[#allocation11 + $0x14] sm:$0xf]
    %v527 = vld [vmem:[#allocation11 + $0x18] sm:$0xf]
    %v528 = vld [vmem:[#allocation11 + $0x1c] sm:$0xf]
    %v529 = vld [vmem:[#allocation11 + $0x20] sm:$0xf]
    %v530 = vld [vmem:[#allocation11 + $0x24] sm:$0xf]
    %v531 = vld [vmem:[#allocation11 + $0x28] sm:$0xf]
    %v532 = vld [vmem:[#allocation11 + $0x2c] sm:$0xf]
    %v533 = vld [vmem:[#allocation11 + $0x30] sm:$0xf]
    %v534 = vld [vmem:[#allocation11 + $0x34] sm:$0xf]
    %v535 = vld [vmem:[#allocation11 + $0x38] sm:$0xf]
    %v536 = vld [vmem:[#allocation11 + $0x3c] sm:$0xf]
    %v537 = vld [vmem:[%s9] sm:$0x1]
    %v539 = vlaneseq
    %v540 = vshrl.u32 %v539, 7
    %v541 = vsub.s32 0, %v540
    %v542 = vrot.slane %v537, %v541
    %v560 = vunpack.c.l.b16 %v521
    %v561 = vunpack.c.l.b16 %v522
    %v562 = vunpack.c.l.b16 %v523
    %v563 = vunpack.c.l.b16 %v524
    %v564 = vunpack.c.l.b16 %v525
    %v565 = vunpack.c.l.b16 %v526
    %v566 = vunpack.c.l.b16 %v527
    %v567 = vunpack.c.l.b16 %v528
    %v568 = vunpack.c.l.b16 %v529
    %v569 = vunpack.c.l.b16 %v530
    %v570 = vunpack.c.l.b16 %v531
    %v571 = vunpack.c.l.b16 %v532
    %v572 = vunpack.c.l.b16 %v533
    %v573 = vunpack.c.l.b16 %v534
    %v574 = vunpack.c.l.b16 %v535
    %v575 = vunpack.c.l.b16 %v536
    %v576 = vpack.c.b16 %v561, %v560
    %v577 = vpack.c.b16 %v563, %v562
    %v578 = vpack.c.b16 %v565, %v564
    %v579 = vpack.c.b16 %v567, %v566
    %v580 = vpack.c.b16 %v569, %v568
    %v581 = vpack.c.b16 %v571, %v570
    %v582 = vpack.c.b16 %v573, %v572
    %v583 = vpack.c.b16 %v575, %v574
    %592 = vmatprep.subr.bf16.mxu0 0
    %593 = vmatpush1.bf16.msra.mxu0 %v576
    %594 = vmatprep.subr.bf16.mxu0 0
    %595 = vmatpush1.bf16.msra.mxu0 %v577
    %596 = vmatprep.subr.bf16.mxu0 0
    %597 = vmatpush1.bf16.msra.mxu0 %v578
    %598 = vmatprep.subr.bf16.mxu0 0
    %599 = vmatpush1.bf16.msra.mxu0 %v579
    %600 = vmatprep.subr.bf16.mxu0 0
    %601 = vmatpush1.bf16.msra.mxu0 %v580
    %602 = vmatprep.subr.bf16.mxu0 0
    %603 = vmatpush1.bf16.msra.mxu0 %v581
    %604 = vmatprep.subr.bf16.mxu0 0
    %605 = vmatpush1.bf16.msra.mxu0 %v582
    %606 = vmatprep.subr.bf16.mxu0 0
    %607 = vmatpush1.bf16.msra.mxu0 %v583
    %608 = vmatprep.subr.bf16.mxu0 0
    %609 = vmatpush1.bf16.msra.mxu0 0
    %610 = vmatprep.subr.bf16.mxu0 0
    %611 = vmatpush1.bf16.msra.mxu0 0
    %612 = vmatprep.subr.bf16.mxu0 0
    %613 = vmatpush1.bf16.msra.mxu0 0
    %614 = vmatprep.subr.bf16.mxu0 0
    %615 = vmatpush1.bf16.msra.mxu0 0
    %616 = vmatprep.subr.bf16.mxu0 0
    %617 = vmatpush1.bf16.msra.mxu0 0
    %618 = vmatprep.subr.bf16.mxu0 0
    %619 = vmatpush1.bf16.msra.mxu0 0
    %620 = vmatprep.subr.bf16.mxu0 0
    %621 = vmatpush1.bf16.msra.mxu0 0
    %622 = vmatprep.subr.bf16.mxu0 0
    %623 = vmatpush1.bf16.msra.mxu0 0
    %624 = vmatprep.mubr.bf16.mxu0 0
    %625 = vmatmul.mubr.bf16.gmra.mrb[0].mxu0 %v520
    %v626 = vpop.f32.mrb[0].mxu0
    %v627 = vadd.f32 %v542, %v626
    %v628 = vpop.f32.mrb[0].mxu0
    %v629 = vpop.f32.mrb[0].mxu0
    %v630 = vpop.f32.mrb[0].mxu0
    %631 = vdwg.mxu0
    %v632 = vmax.f32 %v627, 0.0
    %v633 = vpack.c.bf16 %v632, %v632
    %v634 = vld [vmem:[#allocation13] sm:$0xf]
    %v635 = vld [vmem:[#allocation13 + $0x4] sm:$0xf]
    %v636 = vld [vmem:[#allocation13 + $0x8] sm:$0xf]
    %v637 = vld [vmem:[#allocation13 + $0xc] sm:$0xf]
    %v638 = vld [vmem:[#allocation13 + $0x10] sm:$0xf]
    %v639 = vld [vmem:[#allocation13 + $0x14] sm:$0xf]
    %v640 = vld [vmem:[#allocation13 + $0x18] sm:$0xf]
    %v641 = vld [vmem:[#allocation13 + $0x1c] sm:$0xf]
    %v642 = vld [vmem:[#allocation13 + $0x20] sm:$0xf]
    %v643 = vld [vmem:[#allocation13 + $0x24] sm:$0xf]
    %v644 = vld [vmem:[#allocation13 + $0x28] sm:$0xf]
    %v645 = vld [vmem:[#allocation13 + $0x2c] sm:$0xf]
    %v646 = vld [vmem:[#allocation13 + $0x30] sm:$0xf]
    %v647 = vld [vmem:[#allocation13 + $0x34] sm:$0xf]
    %v648 = vld [vmem:[#allocation13 + $0x38] sm:$0xf]
    %v649 = vld [vmem:[#allocation13 + $0x3c] sm:$0xf]
    %v650 = vld [vmem:[%s11] sm:$0x1]
    %v652 = vlaneseq
    %v653 = vshrl.u32 %v652, 7
    %v654 = vsub.s32 0, %v653
    %v655 = vrot.slane %v650, %v654
    %v673 = vunpack.c.l.b16 %v634
    %v674 = vunpack.c.l.b16 %v635
    %v675 = vunpack.c.l.b16 %v636
    %v676 = vunpack.c.l.b16 %v637
    %v677 = vunpack.c.l.b16 %v638
    %v678 = vunpack.c.l.b16 %v639
    %v679 = vunpack.c.l.b16 %v640
    %v680 = vunpack.c.l.b16 %v641
    %v681 = vunpack.c.l.b16 %v642
    %v682 = vunpack.c.l.b16 %v643
    %v683 = vunpack.c.l.b16 %v644
    %v684 = vunpack.c.l.b16 %v645
    %v685 = vunpack.c.l.b16 %v646
    %v686 = vunpack.c.l.b16 %v647
    %v687 = vunpack.c.l.b16 %v648
    %v688 = vunpack.c.l.b16 %v649
    %v689 = vpack.c.b16 %v674, %v673
    %v690 = vpack.c.b16 %v676, %v675
    %v691 = vpack.c.b16 %v678, %v677
    %v692 = vpack.c.b16 %v680, %v679
    %v693 = vpack.c.b16 %v682, %v681
    %v694 = vpack.c.b16 %v684, %v683
    %v695 = vpack.c.b16 %v686, %v685
    %v696 = vpack.c.b16 %v688, %v687
    %705 = vmatprep.subr.bf16.mxu0 0
    %706 = vmatpush1.bf16.msra.mxu0 %v689
    %707 = vmatprep.subr.bf16.mxu0 0
    %708 = vmatpush1.bf16.msra.mxu0 %v690
    %709 = vmatprep.subr.bf16.mxu0 0
    %710 = vmatpush1.bf16.msra.mxu0 %v691
    %711 = vmatprep.subr.bf16.mxu0 0
    %712 = vmatpush1.bf16.msra.mxu0 %v692
    %713 = vmatprep.subr.bf16.mxu0 0
    %714 = vmatpush1.bf16.msra.mxu0 %v693
    %715 = vmatprep.subr.bf16.mxu0 0
    %716 = vmatpush1.bf16.msra.mxu0 %v694
    %717 = vmatprep.subr.bf16.mxu0 0
    %718 = vmatpush1.bf16.msra.mxu0 %v695
    %719 = vmatprep.subr.bf16.mxu0 0
    %720 = vmatpush1.bf16.msra.mxu0 %v696
    %721 = vmatprep.subr.bf16.mxu0 0
    %722 = vmatpush1.bf16.msra.mxu0 0
    %723 = vmatprep.subr.bf16.mxu0 0
    %724 = vmatpush1.bf16.msra.mxu0 0
    %725 = vmatprep.subr.bf16.mxu0 0
    %726 = vmatpush1.bf16.msra.mxu0 0
    %727 = vmatprep.subr.bf16.mxu0 0
    %728 = vmatpush1.bf16.msra.mxu0 0
    %729 = vmatprep.subr.bf16.mxu0 0
    %730 = vmatpush1.bf16.msra.mxu0 0
    %731 = vmatprep.subr.bf16.mxu0 0
    %732 = vmatpush1.bf16.msra.mxu0 0
    %733 = vmatprep.subr.bf16.mxu0 0
    %734 = vmatpush1.bf16.msra.mxu0 0
    %735 = vmatprep.subr.bf16.mxu0 0
    %736 = vmatpush1.bf16.msra.mxu0 0
    %737 = vmatprep.mubr.bf16.mxu0 0
    %738 = vmatmul.mubr.bf16.gmra.mrb[0].mxu0 %v633
    %v739 = vpop.f32.mrb[0].mxu0
    %v740 = vadd.f32 %v655, %v739
    %v741 = vpop.f32.mrb[0].mxu0
    %v742 = vpop.f32.mrb[0].mxu0
    %v743 = vpop.f32.mrb[0].mxu0
    %744 = vdwg.mxu0
    %v745 = vmax.f32 %v740, 0.0
    %746 = vst [vmem:[#allocation14] sm:$0xf] %v363
    %v747 = vpack.c.bf16 %v745, %v745
    %748 = vst [vmem:[#allocation14 + $0x4] sm:$0xf] %v747
    %s749 = smul.u32 0, 8
    %v750 = vlaneseq
    %v751 = vshrl.u32 %v750, 7
    %v752 = vstv %s749
    %v753 = vadd.s32 %v752, %v751
    %vm754 = vcmp.lt.s32.totalorder %v753, 8
    %v755 = vunpack.c.l.bf16 %v137
    %v756 = vsub.f32 %v755, %v745
    %v757 = vmul.f32 %v756, %v756
    %v758 = vsel %vm754, 1, 0
    %vm759 = vcmp.eq.s32.totalorder %v758, 1
    %v760 = vsel %vm759, %v757, 0.0
    %761 = vadd.xlane.f32.xlu0 %v760
    %v762 = vpop.xlane.xlu0 %761
    %v763 = vrot.slane %v762, 4
    %v764 = vadd.f32 %v762, %v763
    %v765 = vrot.slane %v764, 2
    %v766 = vadd.f32 %v764, %v765
    %v767 = vrot.slane %v766, 1
    %v768 = vadd.f32 %v766, %v767
    %s769 = vtos %v768
    %v770 = vadd.f32 %v509, 1.0
    %v771 = vmul.f32 %v507, %v507
    %v772 = vsub.f32 %v770, %v771
    %v773 = vmul.f32 %v509, 1.442695
    %v774 = vpow.pop %v773
    %v775 = vsub.f32 %v772, %v774
    %v776 = vsel %vm759, %v775, 0.0
    %777 = vadd.xlane.f32.xlu0 %v776
    %v778 = vpop.xlane.xlu0 %777
    %v779 = vrot.slane %v778, 4
    %v780 = vadd.f32 %v778, %v779
    %v781 = vrot.slane %v780, 2
    %v782 = vadd.f32 %v780, %v781
    %v783 = vrot.slane %v782, 1
    %v784 = vadd.f32 %v782, %v783
    %s785 = vtos %v784
    %v786 = vlaneseq
    %v787 = vand.u32 %v786, 127
    %vm788 = vcmp.eq.s32.totalorder %v787, 0
    %vm789 = vcmp.eq.s32.totalorder %v787, 1
    %v790 = vstv %s785
    %v791 = vsel %vm789, %v790, 0.0
    %v792 = vstv %s769
    %v793 = vsel %vm788, %v792, %v791
    %794 = vst [vmem:[#allocation15] sm:$0xff] %v793
    // Predicated region
    $region78: #{tpu_custom_call.1} parent=1 // pred_check
      _
    $region79: #{tpu_custom_call.1} parent=1 // pred_check_branch
      %796 = sbr.rel (0) target = $region81
    $region80: #{tpu_custom_call.1} parent=1 // pred_region
      %s798 = ssub.s32 128, 128
      %799 = vsyncadd [#allocation4], %s798
      %s801 = sshll.u32 [#allocation14], 4
      %s802 = int_to_ptr.vmem [resolvable:$true] %s801
      %804 = dma.vmem_to_hbm [thread:$0]  %s802, 128, %s12, [#allocation4]
    $region81: #{tpu_custom_call.1} parent=1 // pred_fallthru
      _
    // Predicated region
    $region82: #{tpu_custom_call.1} parent=1 // pred_check
      _
    $region83: #{tpu_custom_call.1} parent=1 // pred_check_branch
      %806 = sbr.rel (0) target = $region85
    $region84: #{tpu_custom_call.1} parent=1 // pred_region
      %s808 = ssub.s32 128, 128
      %809 = vsyncadd [#allocation16], %s808
      %s811 = sshll.u32 [#allocation15], 4
      %s812 = int_to_ptr.vmem [resolvable:$true] %s811
      %814 = dma.vmem_to_hbm [thread:$0]  %s812, 128, %s13, [#allocation16]
    $region85: #{tpu_custom_call.1} parent=1 // pred_fallthru
      _
    // Predicated region
    $region86: #{tpu_custom_call.1} parent=1 // pred_check
      _
    $region87: #{tpu_custom_call.1} parent=1 // pred_check_branch
      %816 = sbr.rel (0) target = $region89
    $region88: #{tpu_custom_call.1} parent=1 // pred_region
      %817 = dma.done [#allocation4], 128
    $region89: #{tpu_custom_call.1} parent=1 // pred_fallthru
      _
    // Predicated region
    $region90: #{tpu_custom_call.1} parent=1 // pred_check
      _
    $region91: #{tpu_custom_call.1} parent=1 // pred_check_branch
      %819 = sbr.rel (0) target = $region93
    $region92: #{tpu_custom_call.1} parent=1 // pred_region
      %820 = dma.done [#allocation16], 128
    $region93: #{tpu_custom_call.1} parent=1 // pred_fallthru
      _
    %821 = vsyncpa [#allocation3], 1
    %822 = vsyncpa [#allocation6], 1
    %823 = vsyncpa [#allocation9], 1
    %824 = vsyncpa [#allocation12], 1
    %825 = vsyncpa [#allocation4], 1
    %826 = vsyncpa [#allocation16], 1

</llo_original>
